<compile_context>
chip_gen: v6e
topology: v6e:2x2x1
jax: 0.10.0
libtpu: 0.0.40
codegen_flags: <defaults>
</compile_context>

<pallas_src>
import jax
import jax.numpy as jnp
from jax.experimental import pallas as pl
from jax.experimental.pallas import tpu as pltpu

NUM_ROADS = 492
SEQ_LEN = 5
EMBED_DIM = 16
HIDDEN_DIM = 64

GP = 128                                   # per-gate lane stride (padded from H=64)
OUT_PAD = 512                              # lane-dense FC/softmax width >= NUM_ROADS
N_PAD = ((NUM_ROADS + 7) // 8) * 8         # 496: sublane-padded table rows


def _lstm_fc_softmax_kernel(ids_ref, xw_ref, whh_ref, wfc_ref, bfc_ref, o_ref):
    """ids: SMEM (B, T) int32; xw: (N_PAD, 4*GP) precomputed embed@W_ih + bias;
    whh: (H, 4*GP); wfc: (H, OUT_PAD); bfc: (1, OUT_PAD); o: (B, OUT_PAD)."""
    B, T = ids_ref.shape
    H = whh_ref.shape[0]

    whh = whh_ref[...]                                    # (H, 4*GP), resident in vregs

    def gather_step(t):
        # Gather the precomputed input projections for all B rows of timestep t.
        # Off the serial h-dependency chain; dynamic sublane slices from the VMEM table.
        rows = [xw_ref[pl.ds(ids_ref[b, t], 1), :] for b in range(B)]   # B x (1, 4*GP)
        return jnp.concatenate(rows, axis=0)                            # (B, 4*GP)

    def gates_to_hc(gates, c_prev, first):
        # Gate blocks are 128-lane aligned (starts 0/128/256/384); take first H lanes.
        i_g = jax.nn.sigmoid(gates[:, 0 * GP:0 * GP + H])
        f_g = jax.nn.sigmoid(gates[:, 1 * GP:1 * GP + H])
        g_g = jnp.tanh(gates[:, 2 * GP:2 * GP + H])
        o_g = jax.nn.sigmoid(gates[:, 3 * GP:3 * GP + H])
        c = i_g * g_g if first else f_g * c_prev + i_g * g_g
        h = o_g * jnp.tanh(c)
        return h, c                                        # both (B, H)

    # t = 0: h = c = 0, so gates are exactly the precomputed input projection.
    h, c = gates_to_hc(gather_step(0), None, True)

    # SEQ_LEN is tiny (5): unroll; only h @ W_hh remains on the serial chain.
    for t in range(1, T):
        gates = gather_step(t) + jnp.dot(h, whh, preferred_element_type=jnp.float32)
        h, c = gates_to_hc(gates, c, False)

    # Last-step hidden -> FC -> softmax (dim=1); padded columns carry -1e30 bias.
    logits = (jnp.dot(h, wfc_ref[...], preferred_element_type=jnp.float32)
              + bfc_ref[...])                              # (B, OUT_PAD)
    m = jnp.max(logits, axis=-1, keepdims=True)
    e = jnp.exp(logits - m)
    s = jnp.sum(e, axis=-1, keepdims=True)
    o_ref[...] = e * pl.reciprocal(s, approx=False)


def lstm_fc_softmax(road_ids, xw_table, whh_p, wfc_p, bfc_p):
    B = road_ids.shape[0]
    smem = pl.BlockSpec(memory_space=pltpu.MemorySpace.SMEM)
    vmem = pl.BlockSpec(memory_space=pltpu.MemorySpace.VMEM)
    out = pl.pallas_call(
        _lstm_fc_softmax_kernel,
        out_shape=jax.ShapeDtypeStruct((B, OUT_PAD), jnp.float32),
        in_specs=[smem, vmem, vmem, vmem, vmem],
        out_specs=vmem,
    )(road_ids, xw_table, whh_p, wfc_p, bfc_p)
    return out[:, :NUM_ROADS]


def init_params(key):
    """Raw (PyTorch-equivalent) parameters."""
    k_emb, k_ih, k_hh, k_fc, k_fcb = jax.random.split(key, 5)
    H, E = HIDDEN_DIM, EMBED_DIM

    # Embedding table; padding_idx=-1 -> row NUM_ROADS-1 zeroed.
    embed = jax.random.normal(k_emb, (NUM_ROADS, E), jnp.float32)
    embed = embed.at[NUM_ROADS - 1].set(0.0)

    # weight_ih (xavier uniform), stored transposed as (E, 4H); gate order (i, f, g, o).
    limit_ih = (6.0 / (4 * H + E)) ** 0.5
    w_ih = jax.random.uniform(k_ih, (E, 4 * H), jnp.float32, -limit_ih, limit_ih)

    # weight_hh: orthogonal init via QR, stored transposed as (H, 4H)
    a = jax.random.normal(k_hh, (4 * H, H), jnp.float32)
    q, _ = jnp.linalg.qr(a)
    w_hh = q.T                                             # (H, 4H)

    # bias_ih: zeros with forget-gate slice (H:2H) = 1; bias_hh: zeros. Combined:
    b = jnp.zeros((1, 4 * H), jnp.float32)
    b = b.at[:, H:2 * H].set(1.0)

    # FC: torch Linear(H, NUM_ROADS), stored transposed as (H, NUM_ROADS).
    limit_fc = (1.0 / H) ** 0.5
    w_fc = jax.random.uniform(k_fc, (H, NUM_ROADS), jnp.float32, -limit_fc, limit_fc)
    b_fc = jax.random.uniform(k_fcb, (NUM_ROADS,), jnp.float32, -limit_fc, limit_fc)

    return embed, w_ih, w_hh, b, w_fc, b_fc


def pack_kernel_params(params):
    """Derive the kernel-side (gate-padded, pre-fused) parameter layout."""
    embed, w_ih, w_hh, b, w_fc, b_fc = params
    H = HIDDEN_DIM

    # Precomputed input projection table (embed @ W_ih + bias), gate-padded to 4*128.
    xw = embed @ w_ih + b                                  # (NUM_ROADS, 4H)
    xw_table = jnp.zeros((N_PAD, 4 * GP), jnp.float32)
    whh_p = jnp.zeros((H, 4 * GP), jnp.float32)
    for g in range(4):
        xw_table = xw_table.at[:NUM_ROADS, g * GP:g * GP + H].set(xw[:, g * H:(g + 1) * H])
        whh_p = whh_p.at[:, g * GP:g * GP + H].set(w_hh[:, g * H:(g + 1) * H])

    # FC padded to OUT_PAD lanes; padded bias entries -1e30 so softmax kills them.
    wfc_p = jnp.zeros((H, OUT_PAD), jnp.float32).at[:, :NUM_ROADS].set(w_fc)
    bfc_p = jnp.full((1, OUT_PAD), -1e30, jnp.float32).at[0, :NUM_ROADS].set(b_fc)

    return xw_table, whh_p, wfc_p, bfc_p


def forward(road_ids, kernel_params):
    xw_table, whh_p, wfc_p, bfc_p = kernel_params
    return lstm_fc_softmax(road_ids, xw_table, whh_p, wfc_p, bfc_p)


def reference_forward(road_ids, params):
    """Pure-JAX reference of the same semantics (correctness check)."""
    embed, w_ih, w_hh, b, w_fc, b_fc = params
    H = HIDDEN_DIM
    x_emb = embed[road_ids]
    B = x_emb.shape[0]
    h = jnp.zeros((B, H), jnp.float32)
    c = jnp.zeros((B, H), jnp.float32)
    for t in range(SEQ_LEN):
        gates = x_emb[:, t, :] @ w_ih + h @ w_hh + b
        i_g = jax.nn.sigmoid(gates[:, 0 * H:1 * H])
        f_g = jax.nn.sigmoid(gates[:, 1 * H:2 * H])
        g_g = jnp.tanh(gates[:, 2 * H:3 * H])
        o_g = jax.nn.sigmoid(gates[:, 3 * H:4 * H])
        c = f_g * c + i_g * g_g
        h = o_g * jnp.tanh(c)
    logits = h @ w_fc + b_fc
    return jax.nn.softmax(logits, axis=1)


if __name__ == "__main__":
    key = jax.random.PRNGKey(0)
    k_params, k_ids = jax.random.split(key)

    params = init_params(k_params)
    kernel_params = pack_kernel_params(params)

    B = 8
    road_ids = jax.random.randint(k_ids, (B, SEQ_LEN), 0, NUM_ROADS, jnp.int32)

    out = forward(road_ids, kernel_params)
    out = jax.block_until_ready(out)

    ref = reference_forward(road_ids, params)
    assert out.shape == (B, NUM_ROADS)
    assert jnp.allclose(out, ref, atol=1e-5, rtol=1e-5), "mismatch vs JAX reference"
    assert jnp.allclose(jnp.sum(out, axis=1), 1.0, atol=1e-4), "softmax rows must sum to 1"

    print("KERNEL_OK")
</pallas_src>

<mosaic_0001>
module attributes {stable_mosaic.version = 11 : i64} {
  func.func @_lstm_fc_softmax_kernel(%arg0: memref<8x5xi32, #tpu.memory_space<smem>>, %arg1: memref<496x512xf32, #tpu.memory_space<vmem>>, %arg2: memref<64x512xf32, #tpu.memory_space<vmem>>, %arg3: memref<64x512xf32, #tpu.memory_space<vmem>>, %arg4: memref<1x512xf32, #tpu.memory_space<vmem>>, %arg5: memref<8x512xf32, #tpu.memory_space<vmem>>) attributes {dimension_semantics = [], scalar_prefetch = 0 : i64, scratch_operands = 0 : i64, tpu.core_type = #tpu.core_type<tc>} {
    %c0 = arith.constant 0 : index
    %c0_0 = arith.constant 0 : index
    %0 = vector.load %arg2[%c0, %c0_0] : memref<64x512xf32, #tpu.memory_space<vmem>>, vector<64x512xf32>
    %c0_1 = arith.constant 0 : index
    %c0_2 = arith.constant 0 : index
    %1 = memref.load %arg0[%c0_1, %c0_2] : memref<8x5xi32, #tpu.memory_space<smem>>
    %2 = arith.index_cast %1 : i32 to index
    %c0_3 = arith.constant 0 : index
    %3 = vector.load %arg1[%2, %c0_3] : memref<496x512xf32, #tpu.memory_space<vmem>>, vector<1x512xf32>
    %c1 = arith.constant 1 : index
    %c0_4 = arith.constant 0 : index
    %4 = memref.load %arg0[%c1, %c0_4] : memref<8x5xi32, #tpu.memory_space<smem>>
    %5 = arith.index_cast %4 : i32 to index
    %c0_5 = arith.constant 0 : index
    %6 = vector.load %arg1[%5, %c0_5] : memref<496x512xf32, #tpu.memory_space<vmem>>, vector<1x512xf32>
    %c2 = arith.constant 2 : index
    %c0_6 = arith.constant 0 : index
    %7 = memref.load %arg0[%c2, %c0_6] : memref<8x5xi32, #tpu.memory_space<smem>>
    %8 = arith.index_cast %7 : i32 to index
    %c0_7 = arith.constant 0 : index
    %9 = vector.load %arg1[%8, %c0_7] : memref<496x512xf32, #tpu.memory_space<vmem>>, vector<1x512xf32>
    %c3 = arith.constant 3 : index
    %c0_8 = arith.constant 0 : index
    %10 = memref.load %arg0[%c3, %c0_8] : memref<8x5xi32, #tpu.memory_space<smem>>
    %11 = arith.index_cast %10 : i32 to index
    %c0_9 = arith.constant 0 : index
    %12 = vector.load %arg1[%11, %c0_9] : memref<496x512xf32, #tpu.memory_space<vmem>>, vector<1x512xf32>
    %c4 = arith.constant 4 : index
    %c0_10 = arith.constant 0 : index
    %13 = memref.load %arg0[%c4, %c0_10] : memref<8x5xi32, #tpu.memory_space<smem>>
    %14 = arith.index_cast %13 : i32 to index
    %c0_11 = arith.constant 0 : index
    %15 = vector.load %arg1[%14, %c0_11] : memref<496x512xf32, #tpu.memory_space<vmem>>, vector<1x512xf32>
    %c5 = arith.constant 5 : index
    %c0_12 = arith.constant 0 : index
    %16 = memref.load %arg0[%c5, %c0_12] : memref<8x5xi32, #tpu.memory_space<smem>>
    %17 = arith.index_cast %16 : i32 to index
    %c0_13 = arith.constant 0 : index
    %18 = vector.load %arg1[%17, %c0_13] : memref<496x512xf32, #tpu.memory_space<vmem>>, vector<1x512xf32>
    %c6 = arith.constant 6 : index
    %c0_14 = arith.constant 0 : index
    %19 = memref.load %arg0[%c6, %c0_14] : memref<8x5xi32, #tpu.memory_space<smem>>
    %20 = arith.index_cast %19 : i32 to index
    %c0_15 = arith.constant 0 : index
    %21 = vector.load %arg1[%20, %c0_15] : memref<496x512xf32, #tpu.memory_space<vmem>>, vector<1x512xf32>
    %c7 = arith.constant 7 : index
    %c0_16 = arith.constant 0 : index
    %22 = memref.load %arg0[%c7, %c0_16] : memref<8x5xi32, #tpu.memory_space<smem>>
    %23 = arith.index_cast %22 : i32 to index
    %c0_17 = arith.constant 0 : index
    %24 = vector.load %arg1[%23, %c0_17] : memref<496x512xf32, #tpu.memory_space<vmem>>, vector<1x512xf32>
    %25 = tpu.concatenate %3, %6, %9, %12, %15, %18, %21, %24 in 0 : vector<1x512xf32>, vector<1x512xf32>, vector<1x512xf32>, vector<1x512xf32>, vector<1x512xf32>, vector<1x512xf32>, vector<1x512xf32>, vector<1x512xf32> -> vector<8x512xf32>
    %26 = vector.extract_strided_slice %25 {offsets = [0, 0], sizes = [8, 64], strides = [1, 1]} : vector<8x512xf32> to vector<8x64xf32>
    %27 = arith.negf %26 : vector<8x64xf32>
    %28 = math.exp %27 : vector<8x64xf32>
    %cst = arith.constant 1.000000e+00 : f32
    %29 = vector.broadcast %cst : f32 to vector<8x64xf32>
    %30 = arith.addf %29, %28 : vector<8x64xf32>
    %31 = arith.divf %29, %30 : vector<8x64xf32>
    %32 = vector.extract_strided_slice %25 {offsets = [0, 256], sizes = [8, 64], strides = [1, 1]} : vector<8x512xf32> to vector<8x64xf32>
    %33 = math.tanh %32 : vector<8x64xf32>
    %34 = vector.extract_strided_slice %25 {offsets = [0, 384], sizes = [8, 64], strides = [1, 1]} : vector<8x512xf32> to vector<8x64xf32>
    %35 = arith.negf %34 : vector<8x64xf32>
    %36 = math.exp %35 : vector<8x64xf32>
    %cst_18 = arith.constant 1.000000e+00 : f32
    %37 = vector.broadcast %cst_18 : f32 to vector<8x64xf32>
    %38 = arith.addf %37, %36 : vector<8x64xf32>
    %39 = arith.divf %37, %38 : vector<8x64xf32>
    %40 = arith.mulf %31, %33 : vector<8x64xf32>
    %41 = math.tanh %40 : vector<8x64xf32>
    %42 = arith.mulf %39, %41 : vector<8x64xf32>
    %c0_19 = arith.constant 0 : index
    %c1_20 = arith.constant 1 : index
    %43 = memref.load %arg0[%c0_19, %c1_20] : memref<8x5xi32, #tpu.memory_space<smem>>
    %44 = arith.index_cast %43 : i32 to index
    %c0_21 = arith.constant 0 : index
    %45 = vector.load %arg1[%44, %c0_21] : memref<496x512xf32, #tpu.memory_space<vmem>>, vector<1x512xf32>
    %c1_22 = arith.constant 1 : index
    %c1_23 = arith.constant 1 : index
    %46 = memref.load %arg0[%c1_22, %c1_23] : memref<8x5xi32, #tpu.memory_space<smem>>
    %47 = arith.index_cast %46 : i32 to index
    %c0_24 = arith.constant 0 : index
    %48 = vector.load %arg1[%47, %c0_24] : memref<496x512xf32, #tpu.memory_space<vmem>>, vector<1x512xf32>
    %c2_25 = arith.constant 2 : index
    %c1_26 = arith.constant 1 : index
    %49 = memref.load %arg0[%c2_25, %c1_26] : memref<8x5xi32, #tpu.memory_space<smem>>
    %50 = arith.index_cast %49 : i32 to index
    %c0_27 = arith.constant 0 : index
    %51 = vector.load %arg1[%50, %c0_27] : memref<496x512xf32, #tpu.memory_space<vmem>>, vector<1x512xf32>
    %c3_28 = arith.constant 3 : index
    %c1_29 = arith.constant 1 : index
    %52 = memref.load %arg0[%c3_28, %c1_29] : memref<8x5xi32, #tpu.memory_space<smem>>
    %53 = arith.index_cast %52 : i32 to index
    %c0_30 = arith.constant 0 : index
    %54 = vector.load %arg1[%53, %c0_30] : memref<496x512xf32, #tpu.memory_space<vmem>>, vector<1x512xf32>
    %c4_31 = arith.constant 4 : index
    %c1_32 = arith.constant 1 : index
    %55 = memref.load %arg0[%c4_31, %c1_32] : memref<8x5xi32, #tpu.memory_space<smem>>
    %56 = arith.index_cast %55 : i32 to index
    %c0_33 = arith.constant 0 : index
    %57 = vector.load %arg1[%56, %c0_33] : memref<496x512xf32, #tpu.memory_space<vmem>>, vector<1x512xf32>
    %c5_34 = arith.constant 5 : index
    %c1_35 = arith.constant 1 : index
    %58 = memref.load %arg0[%c5_34, %c1_35] : memref<8x5xi32, #tpu.memory_space<smem>>
    %59 = arith.index_cast %58 : i32 to index
    %c0_36 = arith.constant 0 : index
    %60 = vector.load %arg1[%59, %c0_36] : memref<496x512xf32, #tpu.memory_space<vmem>>, vector<1x512xf32>
    %c6_37 = arith.constant 6 : index
    %c1_38 = arith.constant 1 : index
    %61 = memref.load %arg0[%c6_37, %c1_38] : memref<8x5xi32, #tpu.memory_space<smem>>
    %62 = arith.index_cast %61 : i32 to index
    %c0_39 = arith.constant 0 : index
    %63 = vector.load %arg1[%62, %c0_39] : memref<496x512xf32, #tpu.memory_space<vmem>>, vector<1x512xf32>
    %c7_40 = arith.constant 7 : index
    %c1_41 = arith.constant 1 : index
    %64 = memref.load %arg0[%c7_40, %c1_41] : memref<8x5xi32, #tpu.memory_space<smem>>
    %65 = arith.index_cast %64 : i32 to index
    %c0_42 = arith.constant 0 : index
    %66 = vector.load %arg1[%65, %c0_42] : memref<496x512xf32, #tpu.memory_space<vmem>>, vector<1x512xf32>
    %67 = tpu.concatenate %45, %48, %51, %54, %57, %60, %63, %66 in 0 : vector<1x512xf32>, vector<1x512xf32>, vector<1x512xf32>, vector<1x512xf32>, vector<1x512xf32>, vector<1x512xf32>, vector<1x512xf32>, vector<1x512xf32> -> vector<8x512xf32>
    %cst_43 = arith.constant dense<0.000000e+00> : vector<8x512xf32>
    %68 = tpu.matmul %42, %0, %cst_43 {dimension_numbers = #tpu.dot_dimension_numbers<[1], [0], [0], [1], [0, 0, 1, 1], [], []>} : vector<8x64xf32>, vector<64x512xf32>, vector<8x512xf32> -> vector<8x512xf32>
    %69 = arith.addf %67, %68 : vector<8x512xf32>
    %70 = vector.extract_strided_slice %69 {offsets = [0, 0], sizes = [8, 64], strides = [1, 1]} : vector<8x512xf32> to vector<8x64xf32>
    %71 = arith.negf %70 : vector<8x64xf32>
    %72 = math.exp %71 : vector<8x64xf32>
    %cst_44 = arith.constant 1.000000e+00 : f32
    %73 = vector.broadcast %cst_44 : f32 to vector<8x64xf32>
    %74 = arith.addf %73, %72 : vector<8x64xf32>
    %75 = arith.divf %73, %74 : vector<8x64xf32>
    %76 = vector.extract_strided_slice %69 {offsets = [0, 128], sizes = [8, 64], strides = [1, 1]} : vector<8x512xf32> to vector<8x64xf32>
    %77 = arith.negf %76 : vector<8x64xf32>
    %78 = math.exp %77 : vector<8x64xf32>
    %cst_45 = arith.constant 1.000000e+00 : f32
    %79 = vector.broadcast %cst_45 : f32 to vector<8x64xf32>
    %80 = arith.addf %79, %78 : vector<8x64xf32>
    %81 = arith.divf %79, %80 : vector<8x64xf32>
    %82 = vector.extract_strided_slice %69 {offsets = [0, 256], sizes = [8, 64], strides = [1, 1]} : vector<8x512xf32> to vector<8x64xf32>
    %83 = math.tanh %82 : vector<8x64xf32>
    %84 = vector.extract_strided_slice %69 {offsets = [0, 384], sizes = [8, 64], strides = [1, 1]} : vector<8x512xf32> to vector<8x64xf32>
    %85 = arith.negf %84 : vector<8x64xf32>
    %86 = math.exp %85 : vector<8x64xf32>
    %cst_46 = arith.constant 1.000000e+00 : f32
    %87 = vector.broadcast %cst_46 : f32 to vector<8x64xf32>
    %88 = arith.addf %87, %86 : vector<8x64xf32>
    %89 = arith.divf %87, %88 : vector<8x64xf32>
    %90 = arith.mulf %81, %40 : vector<8x64xf32>
    %91 = arith.mulf %75, %83 : vector<8x64xf32>
    %92 = arith.addf %90, %91 : vector<8x64xf32>
    %93 = math.tanh %92 : vector<8x64xf32>
    %94 = arith.mulf %89, %93 : vector<8x64xf32>
    %c0_47 = arith.constant 0 : index
    %c2_48 = arith.constant 2 : index
    %95 = memref.load %arg0[%c0_47, %c2_48] : memref<8x5xi32, #tpu.memory_space<smem>>
    %96 = arith.index_cast %95 : i32 to index
    %c0_49 = arith.constant 0 : index
    %97 = vector.load %arg1[%96, %c0_49] : memref<496x512xf32, #tpu.memory_space<vmem>>, vector<1x512xf32>
    %c1_50 = arith.constant 1 : index
    %c2_51 = arith.constant 2 : index
    %98 = memref.load %arg0[%c1_50, %c2_51] : memref<8x5xi32, #tpu.memory_space<smem>>
    %99 = arith.index_cast %98 : i32 to index
    %c0_52 = arith.constant 0 : index
    %100 = vector.load %arg1[%99, %c0_52] : memref<496x512xf32, #tpu.memory_space<vmem>>, vector<1x512xf32>
    %c2_53 = arith.constant 2 : index
    %c2_54 = arith.constant 2 : index
    %101 = memref.load %arg0[%c2_53, %c2_54] : memref<8x5xi32, #tpu.memory_space<smem>>
    %102 = arith.index_cast %101 : i32 to index
    %c0_55 = arith.constant 0 : index
    %103 = vector.load %arg1[%102, %c0_55] : memref<496x512xf32, #tpu.memory_space<vmem>>, vector<1x512xf32>
    %c3_56 = arith.constant 3 : index
    %c2_57 = arith.constant 2 : index
    %104 = memref.load %arg0[%c3_56, %c2_57] : memref<8x5xi32, #tpu.memory_space<smem>>
    %105 = arith.index_cast %104 : i32 to index
    %c0_58 = arith.constant 0 : index
    %106 = vector.load %arg1[%105, %c0_58] : memref<496x512xf32, #tpu.memory_space<vmem>>, vector<1x512xf32>
    %c4_59 = arith.constant 4 : index
    %c2_60 = arith.constant 2 : index
    %107 = memref.load %arg0[%c4_59, %c2_60] : memref<8x5xi32, #tpu.memory_space<smem>>
    %108 = arith.index_cast %107 : i32 to index
    %c0_61 = arith.constant 0 : index
    %109 = vector.load %arg1[%108, %c0_61] : memref<496x512xf32, #tpu.memory_space<vmem>>, vector<1x512xf32>
    %c5_62 = arith.constant 5 : index
    %c2_63 = arith.constant 2 : index
    %110 = memref.load %arg0[%c5_62, %c2_63] : memref<8x5xi32, #tpu.memory_space<smem>>
    %111 = arith.index_cast %110 : i32 to index
    %c0_64 = arith.constant 0 : index
    %112 = vector.load %arg1[%111, %c0_64] : memref<496x512xf32, #tpu.memory_space<vmem>>, vector<1x512xf32>
    %c6_65 = arith.constant 6 : index
    %c2_66 = arith.constant 2 : index
    %113 = memref.load %arg0[%c6_65, %c2_66] : memref<8x5xi32, #tpu.memory_space<smem>>
    %114 = arith.index_cast %113 : i32 to index
    %c0_67 = arith.constant 0 : index
    %115 = vector.load %arg1[%114, %c0_67] : memref<496x512xf32, #tpu.memory_space<vmem>>, vector<1x512xf32>
    %c7_68 = arith.constant 7 : index
    %c2_69 = arith.constant 2 : index
    %116 = memref.load %arg0[%c7_68, %c2_69] : memref<8x5xi32, #tpu.memory_space<smem>>
    %117 = arith.index_cast %116 : i32 to index
    %c0_70 = arith.constant 0 : index
    %118 = vector.load %arg1[%117, %c0_70] : memref<496x512xf32, #tpu.memory_space<vmem>>, vector<1x512xf32>
    %119 = tpu.concatenate %97, %100, %103, %106, %109, %112, %115, %118 in 0 : vector<1x512xf32>, vector<1x512xf32>, vector<1x512xf32>, vector<1x512xf32>, vector<1x512xf32>, vector<1x512xf32>, vector<1x512xf32>, vector<1x512xf32> -> vector<8x512xf32>
    %cst_71 = arith.constant dense<0.000000e+00> : vector<8x512xf32>
    %120 = tpu.matmul %94, %0, %cst_71 {dimension_numbers = #tpu.dot_dimension_numbers<[1], [0], [0], [1], [0, 0, 1, 1], [], []>} : vector<8x64xf32>, vector<64x512xf32>, vector<8x512xf32> -> vector<8x512xf32>
    %121 = arith.addf %119, %120 : vector<8x512xf32>
    %122 = vector.extract_strided_slice %121 {offsets = [0, 0], sizes = [8, 64], strides = [1, 1]} : vector<8x512xf32> to vector<8x64xf32>
    %123 = arith.negf %122 : vector<8x64xf32>
    %124 = math.exp %123 : vector<8x64xf32>
    %cst_72 = arith.constant 1.000000e+00 : f32
    %125 = vector.broadcast %cst_72 : f32 to vector<8x64xf32>
    %126 = arith.addf %125, %124 : vector<8x64xf32>
    %127 = arith.divf %125, %126 : vector<8x64xf32>
    %128 = vector.extract_strided_slice %121 {offsets = [0, 128], sizes = [8, 64], strides = [1, 1]} : vector<8x512xf32> to vector<8x64xf32>
    %129 = arith.negf %128 : vector<8x64xf32>
    %130 = math.exp %129 : vector<8x64xf32>
    %cst_73 = arith.constant 1.000000e+00 : f32
    %131 = vector.broadcast %cst_73 : f32 to vector<8x64xf32>
    %132 = arith.addf %131, %130 : vector<8x64xf32>
    %133 = arith.divf %131, %132 : vector<8x64xf32>
    %134 = vector.extract_strided_slice %121 {offsets = [0, 256], sizes = [8, 64], strides = [1, 1]} : vector<8x512xf32> to vector<8x64xf32>
    %135 = math.tanh %134 : vector<8x64xf32>
    %136 = vector.extract_strided_slice %121 {offsets = [0, 384], sizes = [8, 64], strides = [1, 1]} : vector<8x512xf32> to vector<8x64xf32>
    %137 = arith.negf %136 : vector<8x64xf32>
    %138 = math.exp %137 : vector<8x64xf32>
    %cst_74 = arith.constant 1.000000e+00 : f32
    %139 = vector.broadcast %cst_74 : f32 to vector<8x64xf32>
    %140 = arith.addf %139, %138 : vector<8x64xf32>
    %141 = arith.divf %139, %140 : vector<8x64xf32>
    %142 = arith.mulf %133, %92 : vector<8x64xf32>
    %143 = arith.mulf %127, %135 : vector<8x64xf32>
    %144 = arith.addf %142, %143 : vector<8x64xf32>
    %145 = math.tanh %144 : vector<8x64xf32>
    %146 = arith.mulf %141, %145 : vector<8x64xf32>
    %c0_75 = arith.constant 0 : index
    %c3_76 = arith.constant 3 : index
    %147 = memref.load %arg0[%c0_75, %c3_76] : memref<8x5xi32, #tpu.memory_space<smem>>
    %148 = arith.index_cast %147 : i32 to index
    %c0_77 = arith.constant 0 : index
    %149 = vector.load %arg1[%148, %c0_77] : memref<496x512xf32, #tpu.memory_space<vmem>>, vector<1x512xf32>
    %c1_78 = arith.constant 1 : index
    %c3_79 = arith.constant 3 : index
    %150 = memref.load %arg0[%c1_78, %c3_79] : memref<8x5xi32, #tpu.memory_space<smem>>
    %151 = arith.index_cast %150 : i32 to index
    %c0_80 = arith.constant 0 : index
    %152 = vector.load %arg1[%151, %c0_80] : memref<496x512xf32, #tpu.memory_space<vmem>>, vector<1x512xf32>
    %c2_81 = arith.constant 2 : index
    %c3_82 = arith.constant 3 : index
    %153 = memref.load %arg0[%c2_81, %c3_82] : memref<8x5xi32, #tpu.memory_space<smem>>
    %154 = arith.index_cast %153 : i32 to index
    %c0_83 = arith.constant 0 : index
    %155 = vector.load %arg1[%154, %c0_83] : memref<496x512xf32, #tpu.memory_space<vmem>>, vector<1x512xf32>
    %c3_84 = arith.constant 3 : index
    %c3_85 = arith.constant 3 : index
    %156 = memref.load %arg0[%c3_84, %c3_85] : memref<8x5xi32, #tpu.memory_space<smem>>
    %157 = arith.index_cast %156 : i32 to index
    %c0_86 = arith.constant 0 : index
    %158 = vector.load %arg1[%157, %c0_86] : memref<496x512xf32, #tpu.memory_space<vmem>>, vector<1x512xf32>
    %c4_87 = arith.constant 4 : index
    %c3_88 = arith.constant 3 : index
    %159 = memref.load %arg0[%c4_87, %c3_88] : memref<8x5xi32, #tpu.memory_space<smem>>
    %160 = arith.index_cast %159 : i32 to index
    %c0_89 = arith.constant 0 : index
    %161 = vector.load %arg1[%160, %c0_89] : memref<496x512xf32, #tpu.memory_space<vmem>>, vector<1x512xf32>
    %c5_90 = arith.constant 5 : index
    %c3_91 = arith.constant 3 : index
    %162 = memref.load %arg0[%c5_90, %c3_91] : memref<8x5xi32, #tpu.memory_space<smem>>
    %163 = arith.index_cast %162 : i32 to index
    %c0_92 = arith.constant 0 : index
    %164 = vector.load %arg1[%163, %c0_92] : memref<496x512xf32, #tpu.memory_space<vmem>>, vector<1x512xf32>
    %c6_93 = arith.constant 6 : index
    %c3_94 = arith.constant 3 : index
    %165 = memref.load %arg0[%c6_93, %c3_94] : memref<8x5xi32, #tpu.memory_space<smem>>
    %166 = arith.index_cast %165 : i32 to index
    %c0_95 = arith.constant 0 : index
    %167 = vector.load %arg1[%166, %c0_95] : memref<496x512xf32, #tpu.memory_space<vmem>>, vector<1x512xf32>
    %c7_96 = arith.constant 7 : index
    %c3_97 = arith.constant 3 : index
    %168 = memref.load %arg0[%c7_96, %c3_97] : memref<8x5xi32, #tpu.memory_space<smem>>
    %169 = arith.index_cast %168 : i32 to index
    %c0_98 = arith.constant 0 : index
    %170 = vector.load %arg1[%169, %c0_98] : memref<496x512xf32, #tpu.memory_space<vmem>>, vector<1x512xf32>
    %171 = tpu.concatenate %149, %152, %155, %158, %161, %164, %167, %170 in 0 : vector<1x512xf32>, vector<1x512xf32>, vector<1x512xf32>, vector<1x512xf32>, vector<1x512xf32>, vector<1x512xf32>, vector<1x512xf32>, vector<1x512xf32> -> vector<8x512xf32>
    %cst_99 = arith.constant dense<0.000000e+00> : vector<8x512xf32>
    %172 = tpu.matmul %146, %0, %cst_99 {dimension_numbers = #tpu.dot_dimension_numbers<[1], [0], [0], [1], [0, 0, 1, 1], [], []>} : vector<8x64xf32>, vector<64x512xf32>, vector<8x512xf32> -> vector<8x512xf32>
    %173 = arith.addf %171, %172 : vector<8x512xf32>
    %174 = vector.extract_strided_slice %173 {offsets = [0, 0], sizes = [8, 64], strides = [1, 1]} : vector<8x512xf32> to vector<8x64xf32>
    %175 = arith.negf %174 : vector<8x64xf32>
    %176 = math.exp %175 : vector<8x64xf32>
    %cst_100 = arith.constant 1.000000e+00 : f32
    %177 = vector.broadcast %cst_100 : f32 to vector<8x64xf32>
    %178 = arith.addf %177, %176 : vector<8x64xf32>
    %179 = arith.divf %177, %178 : vector<8x64xf32>
    %180 = vector.extract_strided_slice %173 {offsets = [0, 128], sizes = [8, 64], strides = [1, 1]} : vector<8x512xf32> to vector<8x64xf32>
    %181 = arith.negf %180 : vector<8x64xf32>
    %182 = math.exp %181 : vector<8x64xf32>
    %cst_101 = arith.constant 1.000000e+00 : f32
    %183 = vector.broadcast %cst_101 : f32 to vector<8x64xf32>
    %184 = arith.addf %183, %182 : vector<8x64xf32>
    %185 = arith.divf %183, %184 : vector<8x64xf32>
    %186 = vector.extract_strided_slice %173 {offsets = [0, 256], sizes = [8, 64], strides = [1, 1]} : vector<8x512xf32> to vector<8x64xf32>
    %187 = math.tanh %186 : vector<8x64xf32>
    %188 = vector.extract_strided_slice %173 {offsets = [0, 384], sizes = [8, 64], strides = [1, 1]} : vector<8x512xf32> to vector<8x64xf32>
    %189 = arith.negf %188 : vector<8x64xf32>
    %190 = math.exp %189 : vector<8x64xf32>
    %cst_102 = arith.constant 1.000000e+00 : f32
    %191 = vector.broadcast %cst_102 : f32 to vector<8x64xf32>
    %192 = arith.addf %191, %190 : vector<8x64xf32>
    %193 = arith.divf %191, %192 : vector<8x64xf32>
    %194 = arith.mulf %185, %144 : vector<8x64xf32>
    %195 = arith.mulf %179, %187 : vector<8x64xf32>
    %196 = arith.addf %194, %195 : vector<8x64xf32>
    %197 = math.tanh %196 : vector<8x64xf32>
    %198 = arith.mulf %193, %197 : vector<8x64xf32>
    %c0_103 = arith.constant 0 : index
    %c4_104 = arith.constant 4 : index
    %199 = memref.load %arg0[%c0_103, %c4_104] : memref<8x5xi32, #tpu.memory_space<smem>>
    %200 = arith.index_cast %199 : i32 to index
    %c0_105 = arith.constant 0 : index
    %201 = vector.load %arg1[%200, %c0_105] : memref<496x512xf32, #tpu.memory_space<vmem>>, vector<1x512xf32>
    %c1_106 = arith.constant 1 : index
    %c4_107 = arith.constant 4 : index
    %202 = memref.load %arg0[%c1_106, %c4_107] : memref<8x5xi32, #tpu.memory_space<smem>>
    %203 = arith.index_cast %202 : i32 to index
    %c0_108 = arith.constant 0 : index
    %204 = vector.load %arg1[%203, %c0_108] : memref<496x512xf32, #tpu.memory_space<vmem>>, vector<1x512xf32>
    %c2_109 = arith.constant 2 : index
    %c4_110 = arith.constant 4 : index
    %205 = memref.load %arg0[%c2_109, %c4_110] : memref<8x5xi32, #tpu.memory_space<smem>>
    %206 = arith.index_cast %205 : i32 to index
    %c0_111 = arith.constant 0 : index
    %207 = vector.load %arg1[%206, %c0_111] : memref<496x512xf32, #tpu.memory_space<vmem>>, vector<1x512xf32>
    %c3_112 = arith.constant 3 : index
    %c4_113 = arith.constant 4 : index
    %208 = memref.load %arg0[%c3_112, %c4_113] : memref<8x5xi32, #tpu.memory_space<smem>>
    %209 = arith.index_cast %208 : i32 to index
    %c0_114 = arith.constant 0 : index
    %210 = vector.load %arg1[%209, %c0_114] : memref<496x512xf32, #tpu.memory_space<vmem>>, vector<1x512xf32>
    %c4_115 = arith.constant 4 : index
    %c4_116 = arith.constant 4 : index
    %211 = memref.load %arg0[%c4_115, %c4_116] : memref<8x5xi32, #tpu.memory_space<smem>>
    %212 = arith.index_cast %211 : i32 to index
    %c0_117 = arith.constant 0 : index
    %213 = vector.load %arg1[%212, %c0_117] : memref<496x512xf32, #tpu.memory_space<vmem>>, vector<1x512xf32>
    %c5_118 = arith.constant 5 : index
    %c4_119 = arith.constant 4 : index
    %214 = memref.load %arg0[%c5_118, %c4_119] : memref<8x5xi32, #tpu.memory_space<smem>>
    %215 = arith.index_cast %214 : i32 to index
    %c0_120 = arith.constant 0 : index
    %216 = vector.load %arg1[%215, %c0_120] : memref<496x512xf32, #tpu.memory_space<vmem>>, vector<1x512xf32>
    %c6_121 = arith.constant 6 : index
    %c4_122 = arith.constant 4 : index
    %217 = memref.load %arg0[%c6_121, %c4_122] : memref<8x5xi32, #tpu.memory_space<smem>>
    %218 = arith.index_cast %217 : i32 to index
    %c0_123 = arith.constant 0 : index
    %219 = vector.load %arg1[%218, %c0_123] : memref<496x512xf32, #tpu.memory_space<vmem>>, vector<1x512xf32>
    %c7_124 = arith.constant 7 : index
    %c4_125 = arith.constant 4 : index
    %220 = memref.load %arg0[%c7_124, %c4_125] : memref<8x5xi32, #tpu.memory_space<smem>>
    %221 = arith.index_cast %220 : i32 to index
    %c0_126 = arith.constant 0 : index
    %222 = vector.load %arg1[%221, %c0_126] : memref<496x512xf32, #tpu.memory_space<vmem>>, vector<1x512xf32>
    %223 = tpu.concatenate %201, %204, %207, %210, %213, %216, %219, %222 in 0 : vector<1x512xf32>, vector<1x512xf32>, vector<1x512xf32>, vector<1x512xf32>, vector<1x512xf32>, vector<1x512xf32>, vector<1x512xf32>, vector<1x512xf32> -> vector<8x512xf32>
    %cst_127 = arith.constant dense<0.000000e+00> : vector<8x512xf32>
    %224 = tpu.matmul %198, %0, %cst_127 {dimension_numbers = #tpu.dot_dimension_numbers<[1], [0], [0], [1], [0, 0, 1, 1], [], []>} : vector<8x64xf32>, vector<64x512xf32>, vector<8x512xf32> -> vector<8x512xf32>
    %225 = arith.addf %223, %224 : vector<8x512xf32>
    %226 = vector.extract_strided_slice %225 {offsets = [0, 0], sizes = [8, 64], strides = [1, 1]} : vector<8x512xf32> to vector<8x64xf32>
    %227 = arith.negf %226 : vector<8x64xf32>
    %228 = math.exp %227 : vector<8x64xf32>
    %cst_128 = arith.constant 1.000000e+00 : f32
    %229 = vector.broadcast %cst_128 : f32 to vector<8x64xf32>
    %230 = arith.addf %229, %228 : vector<8x64xf32>
    %231 = arith.divf %229, %230 : vector<8x64xf32>
    %232 = vector.extract_strided_slice %225 {offsets = [0, 128], sizes = [8, 64], strides = [1, 1]} : vector<8x512xf32> to vector<8x64xf32>
    %233 = arith.negf %232 : vector<8x64xf32>
    %234 = math.exp %233 : vector<8x64xf32>
    %cst_129 = arith.constant 1.000000e+00 : f32
    %235 = vector.broadcast %cst_129 : f32 to vector<8x64xf32>
    %236 = arith.addf %235, %234 : vector<8x64xf32>
    %237 = arith.divf %235, %236 : vector<8x64xf32>
    %238 = vector.extract_strided_slice %225 {offsets = [0, 256], sizes = [8, 64], strides = [1, 1]} : vector<8x512xf32> to vector<8x64xf32>
    %239 = math.tanh %238 : vector<8x64xf32>
    %240 = vector.extract_strided_slice %225 {offsets = [0, 384], sizes = [8, 64], strides = [1, 1]} : vector<8x512xf32> to vector<8x64xf32>
    %241 = arith.negf %240 : vector<8x64xf32>
    %242 = math.exp %241 : vector<8x64xf32>
    %cst_130 = arith.constant 1.000000e+00 : f32
    %243 = vector.broadcast %cst_130 : f32 to vector<8x64xf32>
    %244 = arith.addf %243, %242 : vector<8x64xf32>
    %245 = arith.divf %243, %244 : vector<8x64xf32>
    %246 = arith.mulf %237, %196 : vector<8x64xf32>
    %247 = arith.mulf %231, %239 : vector<8x64xf32>
    %248 = arith.addf %246, %247 : vector<8x64xf32>
    %249 = math.tanh %248 : vector<8x64xf32>
    %250 = arith.mulf %245, %249 : vector<8x64xf32>
    %c0_131 = arith.constant 0 : index
    %c0_132 = arith.constant 0 : index
    %251 = vector.load %arg3[%c0_131, %c0_132] : memref<64x512xf32, #tpu.memory_space<vmem>>, vector<64x512xf32>
    %cst_133 = arith.constant dense<0.000000e+00> : vector<8x512xf32>
    %252 = tpu.matmul %250, %251, %cst_133 {dimension_numbers = #tpu.dot_dimension_numbers<[1], [0], [0], [1], [0, 0, 1, 1], [], []>} : vector<8x64xf32>, vector<64x512xf32>, vector<8x512xf32> -> vector<8x512xf32>
    %c0_134 = arith.constant 0 : index
    %c0_135 = arith.constant 0 : index
    %253 = vector.load %arg4[%c0_134, %c0_135] : memref<1x512xf32, #tpu.memory_space<vmem>>, vector<1x512xf32>
    %254 = vector.broadcast %253 : vector<1x512xf32> to vector<8x512xf32>
    %255 = arith.addf %252, %254 : vector<8x512xf32>
    %cst_136 = arith.constant dense<0xFF800000> : vector<8xf32>
    %256 = vector.multi_reduction <maximumf>, %255, %cst_136 [1] : vector<8x512xf32> to vector<8xf32>
    %257 = vector.shape_cast %256 : vector<8xf32> to vector<8x1xf32>
    %258 = vector.broadcast %257 : vector<8x1xf32> to vector<8x512xf32>
    %259 = arith.subf %255, %258 : vector<8x512xf32>
    %260 = math.exp %259 : vector<8x512xf32>
    %cst_137 = arith.constant dense<0.000000e+00> : vector<8xf32>
    %261 = vector.multi_reduction <add>, %260, %cst_137 [1] : vector<8x512xf32> to vector<8xf32>
    %262 = vector.shape_cast %261 : vector<8xf32> to vector<8x1xf32>
    %263 = tpu.reciprocal %262 : vector<8x1xf32> -> vector<8x1xf32>
    %264 = vector.broadcast %263 : vector<8x1xf32> to vector<8x512xf32>
    %265 = arith.mulf %260, %264 : vector<8x512xf32>
    %c0_138 = arith.constant 0 : index
    %c0_139 = arith.constant 0 : index
    %266 = vector.load %arg5[%c0_138, %c0_139] : memref<8x512xf32, #tpu.memory_space<vmem>>, vector<8x512xf32>
    tpu.vector_store %arg5[%c0_138, %c0_139], %265 {strides = array<i32>} : memref<8x512xf32, #tpu.memory_space<vmem>>, vector<8x512xf32>,
    return
  }
}

</mosaic_0001>

<llo_original>
// kernel: tpu_custom_call.1
$region0: #{tpu_custom_call.1}
  #allocation0 [shape = 'u32[]', space=smem, size = 0x4, offset = 0x4, fixed_abs, tag = 'smem constant byte address 0x4 - core index']
  #allocation1 [shape = 'u32[144,128]{1,0:T(1,128)}', space=vmem, size = 0x12000, scoped, tag = 'internal scratch']
  %s0 = inlined_call_operand.hbm [shape: s32[8,5], index: 0, kind: input, shape index: {}]
  %s1 = inlined_call_operand.hbm [shape: f32[496,512], index: 1, kind: input, shape index: {}]
  %s2 = inlined_call_operand.hbm [shape: f32[64,512], index: 2, kind: input, shape index: {}]
  %s3 = inlined_call_operand.hbm [shape: f32[64,512], index: 3, kind: input, shape index: {}]
  %s4 = inlined_call_operand.vmem [shape: f32[1,512], index: 4, kind: input, shape index: {}]
  %s5 = inlined_call_operand.hbm [shape: f32[8,512], index: 5, kind: output, shape index: {}]
  %s6 = sld [smem:[#allocation0]]
  $region46: #{tpu_custom_call.1} parent=0
    _
  %s8 = ssub.s32 1, %s6
  %s9 = scalar_select 0, %s8, %s6
  $region1: #{tpu_custom_call.1} parent=0
    #allocation2 [shape = 'u8[4096]{0}', space=smem, size = 0x1000, scoped, tag = 'input window, operand 0, single buffered']
    #allocation3 [shape = 's32[1]{0}', space=sflag, size = 0x4, scoped, tag = 'scoped memory for tpu_custom_call.1']
    #allocation4 [shape = 's32[1]{0}', space=sflag, size = 0x4, scoped, tag = 'scoped memory for tpu_custom_call.1']
    #allocation5 [shape = 's32[1]{0}', space=sflag, size = 0x4, scoped, tag = 'scoped memory for tpu_custom_call.1']
    #allocation6 [shape = 'u8[1015808]{0}', space=vmem, size = 0xf8000, scoped, tag = 'input window, operand 1, single buffered']
    #allocation7 [shape = 'u8[131072]{0}', space=vmem, size = 0x20000, scoped, tag = 'input window, operand 2, single buffered']
    #allocation8 [shape = 's32[1]{0}', space=sflag, size = 0x4, scoped, tag = 'scoped memory for tpu_custom_call.1']
    #allocation9 [shape = 'u8[131072]{0}', space=vmem, size = 0x20000, scoped, tag = 'input window, operand 3, single buffered']
    #allocation10 [shape = 'u8[16384]{0}', space=vmem, size = 0x4000, scoped, tag = 'output window, operand 0, single buffered']
    %10 = vsyncpa [#allocation5], 0
    %11 = vsyncpa [#allocation3], 0
    %12 = vsyncpa [#allocation8], 0
    %13 = vsyncpa [#allocation4], 0
    // Predicated region
    $region2: #{tpu_custom_call.1} parent=1 // pred_check
      _
    $region3: #{tpu_custom_call.1} parent=1 // pred_check_branch
      %15 = sbr.rel (0) target = $region5
    $region4: #{tpu_custom_call.1} parent=1 // pred_region
      %s17 = ssub.s32 128, 128
      %18 = vsyncadd [#allocation5], %s17
      %21 = dma.hbm_to_smem %s0, 128, [#allocation2], [#allocation5]
    $region5: #{tpu_custom_call.1} parent=1 // pred_fallthru
      _
    // Predicated region
    $region6: #{tpu_custom_call.1} parent=1 // pred_check
      _
    $region7: #{tpu_custom_call.1} parent=1 // pred_check_branch
      %23 = sbr.rel (0) target = $region9
    $region8: #{tpu_custom_call.1} parent=1 // pred_region
      %s25 = ssub.s32 31744, 31744
      %26 = vsyncadd [#allocation3], %s25
      %s27 = sshll.u32 [#allocation6], 4
      %s28 = int_to_ptr.vmem [resolvable:$true] %s27
      %33 = dma.hbm_to_vmem [thread:$0]  %s1, 31744, %s28, [#allocation3], 512, 512, 32
    $region9: #{tpu_custom_call.1} parent=1 // pred_fallthru
      _
    // Predicated region
    $region10: #{tpu_custom_call.1} parent=1 // pred_check
      _
    $region11: #{tpu_custom_call.1} parent=1 // pred_check_branch
      %35 = sbr.rel (0) target = $region13
    $region12: #{tpu_custom_call.1} parent=1 // pred_region
      %s37 = ssub.s32 4096, 4096
      %38 = vsyncadd [#allocation8], %s37
      %s39 = sshll.u32 [#allocation7], 4
      %s40 = int_to_ptr.vmem [resolvable:$true] %s39
      %45 = dma.hbm_to_vmem [thread:$0]  %s2, 4096, %s40, [#allocation8], 512, 512, 32
    $region13: #{tpu_custom_call.1} parent=1 // pred_fallthru
      _
    // Predicated region
    $region14: #{tpu_custom_call.1} parent=1 // pred_check
      _
    $region15: #{tpu_custom_call.1} parent=1 // pred_check_branch
      %47 = sbr.rel (0) target = $region17
    $region16: #{tpu_custom_call.1} parent=1 // pred_region
      %s49 = ssub.s32 4096, 4096
      %50 = vsyncadd [#allocation8], %s49
      %s51 = sshll.u32 [#allocation9], 4
      %s52 = int_to_ptr.vmem [resolvable:$true] %s51
      %57 = dma.hbm_to_vmem [thread:$0]  %s3, 4096, %s52, [#allocation8], 512, 512, 32
    $region17: #{tpu_custom_call.1} parent=1 // pred_fallthru
      _
    // Predicated region
    $region18: #{tpu_custom_call.1} parent=1 // pred_check
      _
    $region19: #{tpu_custom_call.1} parent=1 // pred_check_branch
      %59 = sbr.rel (0) target = $region21
    $region20: #{tpu_custom_call.1} parent=1 // pred_region
      _
    $region21: #{tpu_custom_call.1} parent=1 // pred_fallthru
      _
    // Predicated region
    $region22: #{tpu_custom_call.1} parent=1 // pred_check
      _
    $region23: #{tpu_custom_call.1} parent=1 // pred_check_branch
      %61 = sbr.rel (0) target = $region25
    $region24: #{tpu_custom_call.1} parent=1 // pred_region
      %62 = dma.done [#allocation5], 128
    $region25: #{tpu_custom_call.1} parent=1 // pred_fallthru
      _
    // Predicated region
    $region26: #{tpu_custom_call.1} parent=1 // pred_check
      _
    $region27: #{tpu_custom_call.1} parent=1 // pred_check_branch
      %64 = sbr.rel (0) target = $region29
    $region28: #{tpu_custom_call.1} parent=1 // pred_region
      %65 = dma.done [#allocation3], 31744
    $region29: #{tpu_custom_call.1} parent=1 // pred_fallthru
      _
    // Predicated region
    $region30: #{tpu_custom_call.1} parent=1 // pred_check
      _
    $region31: #{tpu_custom_call.1} parent=1 // pred_check_branch
      %67 = sbr.rel (0) target = $region33
    $region32: #{tpu_custom_call.1} parent=1 // pred_region
      %68 = dma.done [#allocation8], 4096
    $region33: #{tpu_custom_call.1} parent=1 // pred_fallthru
      _
    // Predicated region
    $region34: #{tpu_custom_call.1} parent=1 // pred_check
      _
    $region35: #{tpu_custom_call.1} parent=1 // pred_check_branch
      %70 = sbr.rel (0) target = $region37
    $region36: #{tpu_custom_call.1} parent=1 // pred_region
      %71 = dma.done [#allocation8], 4096
    $region37: #{tpu_custom_call.1} parent=1 // pred_fallthru
      _
    %72 = sfence
    %v73 = vld [vmem:[#allocation7] sm:$0xff]
    %v74 = vld [vmem:[#allocation7 + $0x8] sm:$0xff]
    %v75 = vld [vmem:[#allocation7 + $0x10] sm:$0xff]
    %v76 = vld [vmem:[#allocation7 + $0x18] sm:$0xff]
    %v77 = vld [vmem:[#allocation7 + $0x20] sm:$0xff]
    %v78 = vld [vmem:[#allocation7 + $0x28] sm:$0xff]
    %v79 = vld [vmem:[#allocation7 + $0x30] sm:$0xff]
    %v80 = vld [vmem:[#allocation7 + $0x38] sm:$0xff]
    %v81 = vld [vmem:[#allocation7 + $0x40] sm:$0xff]
    %v82 = vld [vmem:[#allocation7 + $0x48] sm:$0xff]
    %v83 = vld [vmem:[#allocation7 + $0x50] sm:$0xff]
    %v84 = vld [vmem:[#allocation7 + $0x58] sm:$0xff]
    %v85 = vld [vmem:[#allocation7 + $0x60] sm:$0xff]
    %v86 = vld [vmem:[#allocation7 + $0x68] sm:$0xff]
    %v87 = vld [vmem:[#allocation7 + $0x70] sm:$0xff]
    %v88 = vld [vmem:[#allocation7 + $0x78] sm:$0xff]
    %v89 = vld [vmem:[#allocation7 + $0x80] sm:$0xff]
    %v90 = vld [vmem:[#allocation7 + $0x88] sm:$0xff]
    %v91 = vld [vmem:[#allocation7 + $0x90] sm:$0xff]
    %v92 = vld [vmem:[#allocation7 + $0x98] sm:$0xff]
    %v93 = vld [vmem:[#allocation7 + $0xa0] sm:$0xff]
    %v94 = vld [vmem:[#allocation7 + $0xa8] sm:$0xff]
    %v95 = vld [vmem:[#allocation7 + $0xb0] sm:$0xff]
    %v96 = vld [vmem:[#allocation7 + $0xb8] sm:$0xff]
    %v97 = vld [vmem:[#allocation7 + $0xc0] sm:$0xff]
    %v98 = vld [vmem:[#allocation7 + $0xc8] sm:$0xff]
    %v99 = vld [vmem:[#allocation7 + $0xd0] sm:$0xff]
    %v100 = vld [vmem:[#allocation7 + $0xd8] sm:$0xff]
    %v101 = vld [vmem:[#allocation7 + $0xe0] sm:$0xff]
    %v102 = vld [vmem:[#allocation7 + $0xe8] sm:$0xff]
    %v103 = vld [vmem:[#allocation7 + $0xf0] sm:$0xff]
    %v104 = vld [vmem:[#allocation7 + $0xf8] sm:$0xff]
    %s105 = sld [smem:[#allocation2]]
    %s106 = sshra.s32 %s105, 3
    %s107 = sand.u32 %s105, 7
    %s108 = sshra.s32 %s105, 3
    %s109 = sand.u32 %s105, 7
    %s110 = smul.u32 %s106, 4
    %s111 = smul.u32 %s110, 8
    %s112 = sadd.s32 %s111, %s109
    %s113 = scalar_lea.vmem [#allocation6], %s112
    %v114 = vld [vmem:[%s113] ss:$8 sm:$0xf]
    %s115 = sld [smem:[#allocation2 + $0x80]]
    %s116 = sshra.s32 %s115, 3
    %s117 = sand.u32 %s115, 7
    %s118 = sshra.s32 %s115, 3
    %s119 = sand.u32 %s115, 7
    %s120 = smul.u32 %s116, 4
    %s121 = smul.u32 %s120, 8
    %s122 = sadd.s32 %s121, %s119
    %s123 = scalar_lea.vmem [#allocation6], %s122
    %v124 = vld [vmem:[%s123] ss:$8 sm:$0xf]
    %s125 = sld [smem:[#allocation2 + $0x100]]
    %s126 = sshra.s32 %s125, 3
    %s127 = sand.u32 %s125, 7
    %s128 = sshra.s32 %s125, 3
    %s129 = sand.u32 %s125, 7
    %s130 = smul.u32 %s126, 4
    %s131 = smul.u32 %s130, 8
    %s132 = sadd.s32 %s131, %s129
    %s133 = scalar_lea.vmem [#allocation6], %s132
    %v134 = vld [vmem:[%s133] ss:$8 sm:$0xf]
    %s135 = sld [smem:[#allocation2 + $0x180]]
    %s136 = sshra.s32 %s135, 3
    %s137 = sand.u32 %s135, 7
    %s138 = sshra.s32 %s135, 3
    %s139 = sand.u32 %s135, 7
    %s140 = smul.u32 %s136, 4
    %s141 = smul.u32 %s140, 8
    %s142 = sadd.s32 %s141, %s139
    %s143 = scalar_lea.vmem [#allocation6], %s142
    %v144 = vld [vmem:[%s143] ss:$8 sm:$0xf]
    %s145 = sld [smem:[#allocation2 + $0x200]]
    %s146 = sshra.s32 %s145, 3
    %s147 = sand.u32 %s145, 7
    %s148 = sshra.s32 %s145, 3
    %s149 = sand.u32 %s145, 7
    %s150 = smul.u32 %s146, 4
    %s151 = smul.u32 %s150, 8
    %s152 = sadd.s32 %s151, %s149
    %s153 = scalar_lea.vmem [#allocation6], %s152
    %v154 = vld [vmem:[%s153] ss:$8 sm:$0xf]
    %s155 = sld [smem:[#allocation2 + $0x280]]
    %s156 = sshra.s32 %s155, 3
    %s157 = sand.u32 %s155, 7
    %s158 = sshra.s32 %s155, 3
    %s159 = sand.u32 %s155, 7
    %s160 = smul.u32 %s156, 4
    %s161 = smul.u32 %s160, 8
    %s162 = sadd.s32 %s161, %s159
    %s163 = scalar_lea.vmem [#allocation6], %s162
    %v164 = vld [vmem:[%s163] ss:$8 sm:$0xf]
    %s165 = sld [smem:[#allocation2 + $0x300]]
    %s166 = sshra.s32 %s165, 3
    %s167 = sand.u32 %s165, 7
    %s168 = sshra.s32 %s165, 3
    %s169 = sand.u32 %s165, 7
    %s170 = smul.u32 %s166, 4
    %s171 = smul.u32 %s170, 8
    %s172 = sadd.s32 %s171, %s169
    %s173 = scalar_lea.vmem [#allocation6], %s172
    %v174 = vld [vmem:[%s173] ss:$8 sm:$0xf]
    %s175 = sld [smem:[#allocation2 + $0x380]]
    %s176 = sshra.s32 %s175, 3
    %s177 = sand.u32 %s175, 7
    %s178 = sshra.s32 %s175, 3
    %s179 = sand.u32 %s175, 7
    %s180 = smul.u32 %s176, 4
    %s181 = smul.u32 %s180, 8
    %s182 = sadd.s32 %s181, %s179
    %s183 = scalar_lea.vmem [#allocation6], %s182
    %v184 = vld [vmem:[%s183] ss:$8 sm:$0xf]
    %v186 = vlaneseq
    %v187 = vshrl.u32 %v186, 7
    %v188 = vsub.s32 0, %v187
    %v189 = vrot.slane %v114, %v188
    %v190 = vlaneseq
    %v191 = vshrl.u32 %v190, 7
    %v192 = vsub.s32 2, %v191
    %v193 = vrot.slane %v114, %v192
    %v194 = vlaneseq
    %v195 = vshrl.u32 %v194, 7
    %v196 = vsub.s32 3, %v195
    %v197 = vrot.slane %v114, %v196
    %v202 = vlaneseq
    %v203 = vshrl.u32 %v202, 7
    %v204 = vsub.s32 0, %v203
    %v205 = vrot.slane %v124, %v204
    %v206 = vlaneseq
    %v207 = vshrl.u32 %v206, 7
    %v208 = vsub.s32 2, %v207
    %v209 = vrot.slane %v124, %v208
    %v210 = vlaneseq
    %v211 = vshrl.u32 %v210, 7
    %v212 = vsub.s32 3, %v211
    %v213 = vrot.slane %v124, %v212
    %v218 = vlaneseq
    %v219 = vshrl.u32 %v218, 7
    %v220 = vsub.s32 0, %v219
    %v221 = vrot.slane %v134, %v220
    %v222 = vlaneseq
    %v223 = vshrl.u32 %v222, 7
    %v224 = vsub.s32 2, %v223
    %v225 = vrot.slane %v134, %v224
    %v226 = vlaneseq
    %v227 = vshrl.u32 %v226, 7
    %v228 = vsub.s32 3, %v227
    %v229 = vrot.slane %v134, %v228
    %v234 = vlaneseq
    %v235 = vshrl.u32 %v234, 7
    %v236 = vsub.s32 0, %v235
    %v237 = vrot.slane %v144, %v236
    %v238 = vlaneseq
    %v239 = vshrl.u32 %v238, 7
    %v240 = vsub.s32 2, %v239
    %v241 = vrot.slane %v144, %v240
    %v242 = vlaneseq
    %v243 = vshrl.u32 %v242, 7
    %v244 = vsub.s32 3, %v243
    %v245 = vrot.slane %v144, %v244
    %v250 = vlaneseq
    %v251 = vshrl.u32 %v250, 7
    %v252 = vsub.s32 0, %v251
    %v253 = vrot.slane %v154, %v252
    %v254 = vlaneseq
    %v255 = vshrl.u32 %v254, 7
    %v256 = vsub.s32 2, %v255
    %v257 = vrot.slane %v154, %v256
    %v258 = vlaneseq
    %v259 = vshrl.u32 %v258, 7
    %v260 = vsub.s32 3, %v259
    %v261 = vrot.slane %v154, %v260
    %v266 = vlaneseq
    %v267 = vshrl.u32 %v266, 7
    %v268 = vsub.s32 0, %v267
    %v269 = vrot.slane %v164, %v268
    %v270 = vlaneseq
    %v271 = vshrl.u32 %v270, 7
    %v272 = vsub.s32 2, %v271
    %v273 = vrot.slane %v164, %v272
    %v274 = vlaneseq
    %v275 = vshrl.u32 %v274, 7
    %v276 = vsub.s32 3, %v275
    %v277 = vrot.slane %v164, %v276
    %v282 = vlaneseq
    %v283 = vshrl.u32 %v282, 7
    %v284 = vsub.s32 0, %v283
    %v285 = vrot.slane %v174, %v284
    %v286 = vlaneseq
    %v287 = vshrl.u32 %v286, 7
    %v288 = vsub.s32 2, %v287
    %v289 = vrot.slane %v174, %v288
    %v290 = vlaneseq
    %v291 = vshrl.u32 %v290, 7
    %v292 = vsub.s32 3, %v291
    %v293 = vrot.slane %v174, %v292
    %v298 = vlaneseq
    %v299 = vshrl.u32 %v298, 7
    %v300 = vsub.s32 0, %v299
    %v301 = vrot.slane %v184, %v300
    %v302 = vlaneseq
    %v303 = vshrl.u32 %v302, 7
    %v304 = vsub.s32 2, %v303
    %v305 = vrot.slane %v184, %v304
    %v306 = vlaneseq
    %v307 = vshrl.u32 %v306, 7
    %v308 = vsub.s32 3, %v307
    %v309 = vrot.slane %v184, %v308
    %vm313 = vcmask 1040384
    %v314 = vsel %vm313, %v189, %v205
    %v315 = vsel %vm313, %v193, %v209
    %v316 = vsel %vm313, %v197, %v213
    %vm317 = vcmask 1041408
    %v318 = vsel %vm317, %v314, %v221
    %v319 = vsel %vm317, %v315, %v225
    %v320 = vsel %vm317, %v316, %v229
    %vm321 = vcmask 1042432
    %v322 = vsel %vm321, %v318, %v237
    %v323 = vsel %vm321, %v319, %v241
    %v324 = vsel %vm321, %v320, %v245
    %vm325 = vcmask 1043456
    %v326 = vsel %vm325, %v322, %v253
    %v327 = vsel %vm325, %v323, %v257
    %v328 = vsel %vm325, %v324, %v261
    %vm329 = vcmask 1044480
    %v330 = vsel %vm329, %v326, %v269
    %v331 = vsel %vm329, %v327, %v273
    %v332 = vsel %vm329, %v328, %v277
    %vm333 = vcmask 1045504
    %v334 = vsel %vm333, %v330, %v285
    %v335 = vsel %vm333, %v331, %v289
    %v336 = vsel %vm333, %v332, %v293
    %vm337 = vcmask 1046528
    %v338 = vsel %vm337, %v334, %v301
    %v339 = vsel %vm337, %v335, %v305
    %v340 = vsel %vm337, %v336, %v309
    %v341 = vxor.u32 %v338, 2147483648
    %v342 = vmul.f32 %v341, 1.442695
    %v343 = vpow.pop %v342
    %v344 = vadd.f32 %v343, 1.0
    %v345 = vrcp.pop %v344
    %v346 = vmul.f32 1.0, %v345
    %v347 = vtanh.pop %v339
    %v348 = vxor.u32 %v340, 2147483648
    %v349 = vmul.f32 %v348, 1.442695
    %v350 = vpow.pop %v349
    %v351 = vadd.f32 %v350, 1.0
    %v352 = vrcp.pop %v351
    %v353 = vmul.f32 1.0, %v352
    %v354 = vmul.f32 %v346, %v347
    %v355 = vtanh.pop %v354
    %v356 = vmul.f32 %v353, %v355
    %s357 = sld [smem:[#allocation2 + $0x1]]
    %s358 = sshra.s32 %s357, 3
    %s359 = sand.u32 %s357, 7
    %s360 = sshra.s32 %s357, 3
    %s361 = sand.u32 %s357, 7
    %s362 = smul.u32 %s358, 4
    %s363 = smul.u32 %s362, 8
    %s364 = sadd.s32 %s363, %s361
    %s365 = scalar_lea.vmem [#allocation6], %s364
    %v366 = vld [vmem:[%s365] ss:$8 sm:$0xf]
    %s367 = sld [smem:[#allocation2 + $0x81]]
    %s368 = sshra.s32 %s367, 3
    %s369 = sand.u32 %s367, 7
    %s370 = sshra.s32 %s367, 3
    %s371 = sand.u32 %s367, 7
    %s372 = smul.u32 %s368, 4
    %s373 = smul.u32 %s372, 8
    %s374 = sadd.s32 %s373, %s371
    %s375 = scalar_lea.vmem [#allocation6], %s374
    %v376 = vld [vmem:[%s375] ss:$8 sm:$0xf]
    %s377 = sld [smem:[#allocation2 + $0x101]]
    %s378 = sshra.s32 %s377, 3
    %s379 = sand.u32 %s377, 7
    %s380 = sshra.s32 %s377, 3
    %s381 = sand.u32 %s377, 7
    %s382 = smul.u32 %s378, 4
    %s383 = smul.u32 %s382, 8
    %s384 = sadd.s32 %s383, %s381
    %s385 = scalar_lea.vmem [#allocation6], %s384
    %v386 = vld [vmem:[%s385] ss:$8 sm:$0xf]
    %s387 = sld [smem:[#allocation2 + $0x181]]
    %s388 = sshra.s32 %s387, 3
    %s389 = sand.u32 %s387, 7
    %s390 = sshra.s32 %s387, 3
    %s391 = sand.u32 %s387, 7
    %s392 = smul.u32 %s388, 4
    %s393 = smul.u32 %s392, 8
    %s394 = sadd.s32 %s393, %s391
    %s395 = scalar_lea.vmem [#allocation6], %s394
    %v396 = vld [vmem:[%s395] ss:$8 sm:$0xf]
    %s397 = sld [smem:[#allocation2 + $0x201]]
    %s398 = sshra.s32 %s397, 3
    %s399 = sand.u32 %s397, 7
    %s400 = sshra.s32 %s397, 3
    %s401 = sand.u32 %s397, 7
    %s402 = smul.u32 %s398, 4
    %s403 = smul.u32 %s402, 8
    %s404 = sadd.s32 %s403, %s401
    %s405 = scalar_lea.vmem [#allocation6], %s404
    %v406 = vld [vmem:[%s405] ss:$8 sm:$0xf]
    %s407 = sld [smem:[#allocation2 + $0x281]]
    %s408 = sshra.s32 %s407, 3
    %s409 = sand.u32 %s407, 7
    %s410 = sshra.s32 %s407, 3
    %s411 = sand.u32 %s407, 7
    %s412 = smul.u32 %s408, 4
    %s413 = smul.u32 %s412, 8
    %s414 = sadd.s32 %s413, %s411
    %s415 = scalar_lea.vmem [#allocation6], %s414
    %v416 = vld [vmem:[%s415] ss:$8 sm:$0xf]
    %s417 = sld [smem:[#allocation2 + $0x301]]
    %s418 = sshra.s32 %s417, 3
    %s419 = sand.u32 %s417, 7
    %s420 = sshra.s32 %s417, 3
    %s421 = sand.u32 %s417, 7
    %s422 = smul.u32 %s418, 4
    %s423 = smul.u32 %s422, 8
    %s424 = sadd.s32 %s423, %s421
    %s425 = scalar_lea.vmem [#allocation6], %s424
    %v426 = vld [vmem:[%s425] ss:$8 sm:$0xf]
    %s427 = sld [smem:[#allocation2 + $0x381]]
    %s428 = sshra.s32 %s427, 3
    %s429 = sand.u32 %s427, 7
    %s430 = sshra.s32 %s427, 3
    %s431 = sand.u32 %s427, 7
    %s432 = smul.u32 %s428, 4
    %s433 = smul.u32 %s432, 8
    %s434 = sadd.s32 %s433, %s431
    %s435 = scalar_lea.vmem [#allocation6], %s434
    %v436 = vld [vmem:[%s435] ss:$8 sm:$0xf]
    %v438 = vlaneseq
    %v439 = vshrl.u32 %v438, 7
    %v440 = vsub.s32 0, %v439
    %v441 = vrot.slane %v366, %v440
    %v442 = vlaneseq
    %v443 = vshrl.u32 %v442, 7
    %v444 = vsub.s32 1, %v443
    %v445 = vrot.slane %v366, %v444
    %v446 = vlaneseq
    %v447 = vshrl.u32 %v446, 7
    %v448 = vsub.s32 2, %v447
    %v449 = vrot.slane %v366, %v448
    %v450 = vlaneseq
    %v451 = vshrl.u32 %v450, 7
    %v452 = vsub.s32 3, %v451
    %v453 = vrot.slane %v366, %v452
    %v459 = vlaneseq
    %v460 = vshrl.u32 %v459, 7
    %v461 = vsub.s32 0, %v460
    %v462 = vrot.slane %v376, %v461
    %v463 = vlaneseq
    %v464 = vshrl.u32 %v463, 7
    %v465 = vsub.s32 1, %v464
    %v466 = vrot.slane %v376, %v465
    %v467 = vlaneseq
    %v468 = vshrl.u32 %v467, 7
    %v469 = vsub.s32 2, %v468
    %v470 = vrot.slane %v376, %v469
    %v471 = vlaneseq
    %v472 = vshrl.u32 %v471, 7
    %v473 = vsub.s32 3, %v472
    %v474 = vrot.slane %v376, %v473
    %v480 = vlaneseq
    %v481 = vshrl.u32 %v480, 7
    %v482 = vsub.s32 0, %v481
    %v483 = vrot.slane %v386, %v482
    %v484 = vlaneseq
    %v485 = vshrl.u32 %v484, 7
    %v486 = vsub.s32 1, %v485
    %v487 = vrot.slane %v386, %v486
    %v488 = vlaneseq
    %v489 = vshrl.u32 %v488, 7
    %v490 = vsub.s32 2, %v489
    %v491 = vrot.slane %v386, %v490
    %v492 = vlaneseq
    %v493 = vshrl.u32 %v492, 7
    %v494 = vsub.s32 3, %v493
    %v495 = vrot.slane %v386, %v494
    %v501 = vlaneseq
    %v502 = vshrl.u32 %v501, 7
    %v503 = vsub.s32 0, %v502
    %v504 = vrot.slane %v396, %v503
    %v505 = vlaneseq
    %v506 = vshrl.u32 %v505, 7
    %v507 = vsub.s32 1, %v506
    %v508 = vrot.slane %v396, %v507
    %v509 = vlaneseq
    %v510 = vshrl.u32 %v509, 7
    %v511 = vsub.s32 2, %v510
    %v512 = vrot.slane %v396, %v511
    %v513 = vlaneseq
    %v514 = vshrl.u32 %v513, 7
    %v515 = vsub.s32 3, %v514
    %v516 = vrot.slane %v396, %v515
    %v522 = vlaneseq
    %v523 = vshrl.u32 %v522, 7
    %v524 = vsub.s32 0, %v523
    %v525 = vrot.slane %v406, %v524
    %v526 = vlaneseq
    %v527 = vshrl.u32 %v526, 7
    %v528 = vsub.s32 1, %v527
    %v529 = vrot.slane %v406, %v528
    %v530 = vlaneseq
    %v531 = vshrl.u32 %v530, 7
    %v532 = vsub.s32 2, %v531
    %v533 = vrot.slane %v406, %v532
    %v534 = vlaneseq
    %v535 = vshrl.u32 %v534, 7
    %v536 = vsub.s32 3, %v535
    %v537 = vrot.slane %v406, %v536
    %v543 = vlaneseq
    %v544 = vshrl.u32 %v543, 7
    %v545 = vsub.s32 0, %v544
    %v546 = vrot.slane %v416, %v545
    %v547 = vlaneseq
    %v548 = vshrl.u32 %v547, 7
    %v549 = vsub.s32 1, %v548
    %v550 = vrot.slane %v416, %v549
    %v551 = vlaneseq
    %v552 = vshrl.u32 %v551, 7
    %v553 = vsub.s32 2, %v552
    %v554 = vrot.slane %v416, %v553
    %v555 = vlaneseq
    %v556 = vshrl.u32 %v555, 7
    %v557 = vsub.s32 3, %v556
    %v558 = vrot.slane %v416, %v557
    %v564 = vlaneseq
    %v565 = vshrl.u32 %v564, 7
    %v566 = vsub.s32 0, %v565
    %v567 = vrot.slane %v426, %v566
    %v568 = vlaneseq
    %v569 = vshrl.u32 %v568, 7
    %v570 = vsub.s32 1, %v569
    %v571 = vrot.slane %v426, %v570
    %v572 = vlaneseq
    %v573 = vshrl.u32 %v572, 7
    %v574 = vsub.s32 2, %v573
    %v575 = vrot.slane %v426, %v574
    %v576 = vlaneseq
    %v577 = vshrl.u32 %v576, 7
    %v578 = vsub.s32 3, %v577
    %v579 = vrot.slane %v426, %v578
    %v585 = vlaneseq
    %v586 = vshrl.u32 %v585, 7
    %v587 = vsub.s32 0, %v586
    %v588 = vrot.slane %v436, %v587
    %v589 = vlaneseq
    %v590 = vshrl.u32 %v589, 7
    %v591 = vsub.s32 1, %v590
    %v592 = vrot.slane %v436, %v591
    %v593 = vlaneseq
    %v594 = vshrl.u32 %v593, 7
    %v595 = vsub.s32 2, %v594
    %v596 = vrot.slane %v436, %v595
    %v597 = vlaneseq
    %v598 = vshrl.u32 %v597, 7
    %v599 = vsub.s32 3, %v598
    %v600 = vrot.slane %v436, %v599
    %v605 = vsel %vm313, %v441, %v462
    %v606 = vsel %vm313, %v445, %v466
    %v607 = vsel %vm313, %v449, %v470
    %v608 = vsel %vm313, %v453, %v474
    %v609 = vsel %vm317, %v605, %v483
    %v610 = vsel %vm317, %v606, %v487
    %v611 = vsel %vm317, %v607, %v491
    %v612 = vsel %vm317, %v608, %v495
    %v613 = vsel %vm321, %v609, %v504
    %v614 = vsel %vm321, %v610, %v508
    %v615 = vsel %vm321, %v611, %v512
    %v616 = vsel %vm321, %v612, %v516
    %v617 = vsel %vm325, %v613, %v525
    %v618 = vsel %vm325, %v614, %v529
    %v619 = vsel %vm325, %v615, %v533
    %v620 = vsel %vm325, %v616, %v537
    %v621 = vsel %vm329, %v617, %v546
    %v622 = vsel %vm329, %v618, %v550
    %v623 = vsel %vm329, %v619, %v554
    %v624 = vsel %vm329, %v620, %v558
    %v625 = vsel %vm333, %v621, %v567
    %v626 = vsel %vm333, %v622, %v571
    %v627 = vsel %vm333, %v623, %v575
    %v628 = vsel %vm333, %v624, %v579
    %v629 = vsel %vm337, %v625, %v588
    %v630 = vsel %vm337, %v626, %v592
    %v631 = vsel %vm337, %v627, %v596
    %v632 = vsel %vm337, %v628, %v600
    %vm633 = vcmask 523264
    %v635 = vsel %vm633, %v356, 0
    %637 = vmatprep.subr.mxu0 0.0
    %638 = vmatpush1.msra.mxu0 0.0
    %639 = vmatprep.subr.mxu0 0.0
    %640 = vmatpush1.msra.mxu0 0.0
    %641 = vmatprep.subr.mxu0 0.0
    %642 = vmatpush1.msra.mxu0 0.0
    %643 = vmatprep.subr.mxu0 0.0
    %644 = vmatpush1.msra.mxu0 0.0
    %645 = vmatprep.subr.mxu0 0.0
    %646 = vmatpush1.msra.mxu0 0.0
    %647 = vmatprep.subr.mxu0 0.0
    %648 = vmatpush1.msra.mxu0 0.0
    %649 = vmatprep.subr.mxu0 0.0
    %650 = vmatpush1.msra.mxu0 0.0
    %651 = vmatprep.subr.mxu0 0.0
    %652 = vmatpush1.msra.mxu0 0.0
    %653 = vmatprep.subr.mxu0 %v102
    %654 = vmatpush1.msra.mxu0 %v101
    %655 = vmatprep.subr.mxu0 %v98
    %656 = vmatpush1.msra.mxu0 %v97
    %657 = vmatprep.subr.mxu0 %v94
    %658 = vmatpush1.msra.mxu0 %v93
    %659 = vmatprep.subr.mxu0 %v90
    %660 = vmatpush1.msra.mxu0 %v89
    %661 = vmatprep.subr.mxu0 %v86
    %662 = vmatpush1.msra.mxu0 %v85
    %663 = vmatprep.subr.mxu0 %v82
    %664 = vmatpush1.msra.mxu0 %v81
    %665 = vmatprep.subr.mxu0 %v78
    %666 = vmatpush1.msra.mxu0 %v77
    %667 = vmatprep.subr.mxu0 %v74
    %668 = vmatpush1.msra.mxu0 %v73
    %669 = vmatprep.subr.mxu0 0.0
    %670 = vmatpush2.msra.mxu0 0.0
    %671 = vmatprep.subr.mxu0 0.0
    %672 = vmatpush2.msra.mxu0 0.0
    %673 = vmatprep.subr.mxu0 0.0
    %674 = vmatpush2.msra.mxu0 0.0
    %675 = vmatprep.subr.mxu0 0.0
    %676 = vmatpush2.msra.mxu0 0.0
    %677 = vmatprep.subr.mxu0 0.0
    %678 = vmatpush2.msra.mxu0 0.0
    %679 = vmatprep.subr.mxu0 0.0
    %680 = vmatpush2.msra.mxu0 0.0
    %681 = vmatprep.subr.mxu0 0.0
    %682 = vmatpush2.msra.mxu0 0.0
    %683 = vmatprep.subr.mxu0 0.0
    %684 = vmatpush2.msra.mxu0 0.0
    %685 = vmatprep.subr.mxu0 0.0
    %686 = vmatpush2.msra.mxu0 0.0
    %687 = vmatprep.subr.mxu0 0.0
    %688 = vmatpush2.msra.mxu0 0.0
    %689 = vmatprep.subr.mxu0 0.0
    %690 = vmatpush2.msra.mxu0 0.0
    %691 = vmatprep.subr.mxu0 0.0
    %692 = vmatpush2.msra.mxu0 0.0
    %693 = vmatprep.subr.mxu0 0.0
    %694 = vmatpush2.msra.mxu0 0.0
    %695 = vmatprep.subr.mxu0 0.0
    %696 = vmatpush2.msra.mxu0 0.0
    %697 = vmatprep.subr.mxu0 0.0
    %698 = vmatpush2.msra.mxu0 0.0
    %699 = vmatprep.subr.mxu0 0.0
    %700 = vmatpush2.msra.mxu0 0.0
    %701 = vmatprep.mubr.f32.mxu0 0.0
    %702 = vmatmul.mubr.f32.gmra.mxu0 %v635
    %v703 = vpop.f32.mrf.mxu0
    %v704 = vadd.f32 0.0, %v703
    %v705 = vpop.f32.mrf.mxu0
    %v706 = vadd.f32 0.0, %v705
    %707 = vdwg.mxu0
    %708 = vmatprep.subr.mxu0 0.0
    %709 = vmatpush1.msra.mxu0 0.0
    %710 = vmatprep.subr.mxu0 0.0
    %711 = vmatpush1.msra.mxu0 0.0
    %712 = vmatprep.subr.mxu0 0.0
    %713 = vmatpush1.msra.mxu0 0.0
    %714 = vmatprep.subr.mxu0 0.0
    %715 = vmatpush1.msra.mxu0 0.0
    %716 = vmatprep.subr.mxu0 0.0
    %717 = vmatpush1.msra.mxu0 0.0
    %718 = vmatprep.subr.mxu0 0.0
    %719 = vmatpush1.msra.mxu0 0.0
    %720 = vmatprep.subr.mxu0 0.0
    %721 = vmatpush1.msra.mxu0 0.0
    %722 = vmatprep.subr.mxu0 0.0
    %723 = vmatpush1.msra.mxu0 0.0
    %724 = vmatprep.subr.mxu0 %v104
    %725 = vmatpush1.msra.mxu0 %v103
    %726 = vmatprep.subr.mxu0 %v100
    %727 = vmatpush1.msra.mxu0 %v99
    %728 = vmatprep.subr.mxu0 %v96
    %729 = vmatpush1.msra.mxu0 %v95
    %730 = vmatprep.subr.mxu0 %v92
    %731 = vmatpush1.msra.mxu0 %v91
    %732 = vmatprep.subr.mxu0 %v88
    %733 = vmatpush1.msra.mxu0 %v87
    %734 = vmatprep.subr.mxu0 %v84
    %735 = vmatpush1.msra.mxu0 %v83
    %736 = vmatprep.subr.mxu0 %v80
    %737 = vmatpush1.msra.mxu0 %v79
    %738 = vmatprep.subr.mxu0 %v76
    %739 = vmatpush1.msra.mxu0 %v75
    %740 = vmatprep.subr.mxu0 0.0
    %741 = vmatpush2.msra.mxu0 0.0
    %742 = vmatprep.subr.mxu0 0.0
    %743 = vmatpush2.msra.mxu0 0.0
    %744 = vmatprep.subr.mxu0 0.0
    %745 = vmatpush2.msra.mxu0 0.0
    %746 = vmatprep.subr.mxu0 0.0
    %747 = vmatpush2.msra.mxu0 0.0
    %748 = vmatprep.subr.mxu0 0.0
    %749 = vmatpush2.msra.mxu0 0.0
    %750 = vmatprep.subr.mxu0 0.0
    %751 = vmatpush2.msra.mxu0 0.0
    %752 = vmatprep.subr.mxu0 0.0
    %753 = vmatpush2.msra.mxu0 0.0
    %754 = vmatprep.subr.mxu0 0.0
    %755 = vmatpush2.msra.mxu0 0.0
    %756 = vmatprep.subr.mxu0 0.0
    %757 = vmatpush2.msra.mxu0 0.0
    %758 = vmatprep.subr.mxu0 0.0
    %759 = vmatpush2.msra.mxu0 0.0
    %760 = vmatprep.subr.mxu0 0.0
    %761 = vmatpush2.msra.mxu0 0.0
    %762 = vmatprep.subr.mxu0 0.0
    %763 = vmatpush2.msra.mxu0 0.0
    %764 = vmatprep.subr.mxu0 0.0
    %765 = vmatpush2.msra.mxu0 0.0
    %766 = vmatprep.subr.mxu0 0.0
    %767 = vmatpush2.msra.mxu0 0.0
    %768 = vmatprep.subr.mxu0 0.0
    %769 = vmatpush2.msra.mxu0 0.0
    %770 = vmatprep.subr.mxu0 0.0
    %771 = vmatpush2.msra.mxu0 0.0
    %772 = vmatprep.mubr.f32.mxu0 0.0
    %773 = vmatmul.mubr.f32.gmra.mxu0 %v635
    %v774 = vpop.f32.mrf.mxu0
    %v775 = vadd.f32 0.0, %v774
    %v776 = vpop.f32.mrf.mxu0
    %v777 = vadd.f32 0.0, %v776
    %778 = vdwg.mxu0
    %v779 = vadd.f32 %v629, %v704
    %v780 = vadd.f32 %v630, %v706
    %v781 = vadd.f32 %v631, %v775
    %v782 = vadd.f32 %v632, %v777
    %v783 = vxor.u32 %v779, 2147483648
    %v784 = vmul.f32 %v783, 1.442695
    %v785 = vpow.pop %v784
    %v786 = vadd.f32 %v785, 1.0
    %v787 = vrcp.pop %v786
    %v788 = vmul.f32 1.0, %v787
    %v789 = vxor.u32 %v780, 2147483648
    %v790 = vmul.f32 %v789, 1.442695
    %v791 = vpow.pop %v790
    %v792 = vadd.f32 %v791, 1.0
    %v793 = vrcp.pop %v792
    %v794 = vmul.f32 1.0, %v793
    %v795 = vtanh.pop %v781
    %v796 = vxor.u32 %v782, 2147483648
    %v797 = vmul.f32 %v796, 1.442695
    %v798 = vpow.pop %v797
    %v799 = vadd.f32 %v798, 1.0
    %v800 = vrcp.pop %v799
    %v801 = vmul.f32 1.0, %v800
    %v802 = vmul.f32 %v794, %v354
    %v803 = vmul.f32 %v788, %v795
    %v804 = vadd.f32 %v802, %v803
    %v805 = vtanh.pop %v804
    %v806 = vmul.f32 %v801, %v805
    %s807 = sld [smem:[#allocation2 + $0x2]]
    %s808 = sshra.s32 %s807, 3
    %s809 = sand.u32 %s807, 7
    %s810 = sshra.s32 %s807, 3
    %s811 = sand.u32 %s807, 7
    %s812 = smul.u32 %s808, 4
    %s813 = smul.u32 %s812, 8
    %s814 = sadd.s32 %s813, %s811
    %s815 = scalar_lea.vmem [#allocation6], %s814
    %v816 = vld [vmem:[%s815] ss:$8 sm:$0xf]
    %s817 = sld [smem:[#allocation2 + $0x82]]
    %s818 = sshra.s32 %s817, 3
    %s819 = sand.u32 %s817, 7
    %s820 = sshra.s32 %s817, 3
    %s821 = sand.u32 %s817, 7
    %s822 = smul.u32 %s818, 4
    %s823 = smul.u32 %s822, 8
    %s824 = sadd.s32 %s823, %s821
    %s825 = scalar_lea.vmem [#allocation6], %s824
    %v826 = vld [vmem:[%s825] ss:$8 sm:$0xf]
    %s827 = sld [smem:[#allocation2 + $0x102]]
    %s828 = sshra.s32 %s827, 3
    %s829 = sand.u32 %s827, 7
    %s830 = sshra.s32 %s827, 3
    %s831 = sand.u32 %s827, 7
    %s832 = smul.u32 %s828, 4
    %s833 = smul.u32 %s832, 8
    %s834 = sadd.s32 %s833, %s831
    %s835 = scalar_lea.vmem [#allocation6], %s834
    %v836 = vld [vmem:[%s835] ss:$8 sm:$0xf]
    %s837 = sld [smem:[#allocation2 + $0x182]]
    %s838 = sshra.s32 %s837, 3
    %s839 = sand.u32 %s837, 7
    %s840 = sshra.s32 %s837, 3
    %s841 = sand.u32 %s837, 7
    %s842 = smul.u32 %s838, 4
    %s843 = smul.u32 %s842, 8
    %s844 = sadd.s32 %s843, %s841
    %s845 = scalar_lea.vmem [#allocation6], %s844
    %v846 = vld [vmem:[%s845] ss:$8 sm:$0xf]
    %s847 = sld [smem:[#allocation2 + $0x202]]
    %s848 = sshra.s32 %s847, 3
    %s849 = sand.u32 %s847, 7
    %s850 = sshra.s32 %s847, 3
    %s851 = sand.u32 %s847, 7
    %s852 = smul.u32 %s848, 4
    %s853 = smul.u32 %s852, 8
    %s854 = sadd.s32 %s853, %s851
    %s855 = scalar_lea.vmem [#allocation6], %s854
    %v856 = vld [vmem:[%s855] ss:$8 sm:$0xf]
    %s857 = sld [smem:[#allocation2 + $0x282]]
    %s858 = sshra.s32 %s857, 3
    %s859 = sand.u32 %s857, 7
    %s860 = sshra.s32 %s857, 3
    %s861 = sand.u32 %s857, 7
    %s862 = smul.u32 %s858, 4
    %s863 = smul.u32 %s862, 8
    %s864 = sadd.s32 %s863, %s861
    %s865 = scalar_lea.vmem [#allocation6], %s864
    %v866 = vld [vmem:[%s865] ss:$8 sm:$0xf]
    %s867 = sld [smem:[#allocation2 + $0x302]]
    %s868 = sshra.s32 %s867, 3
    %s869 = sand.u32 %s867, 7
    %s870 = sshra.s32 %s867, 3
    %s871 = sand.u32 %s867, 7
    %s872 = smul.u32 %s868, 4
    %s873 = smul.u32 %s872, 8
    %s874 = sadd.s32 %s873, %s871
    %s875 = scalar_lea.vmem [#allocation6], %s874
    %v876 = vld [vmem:[%s875] ss:$8 sm:$0xf]
    %s877 = sld [smem:[#allocation2 + $0x382]]
    %s878 = sshra.s32 %s877, 3
    %s879 = sand.u32 %s877, 7
    %s880 = sshra.s32 %s877, 3
    %s881 = sand.u32 %s877, 7
    %s882 = smul.u32 %s878, 4
    %s883 = smul.u32 %s882, 8
    %s884 = sadd.s32 %s883, %s881
    %s885 = scalar_lea.vmem [#allocation6], %s884
    %v886 = vld [vmem:[%s885] ss:$8 sm:$0xf]
    %v888 = vlaneseq
    %v889 = vshrl.u32 %v888, 7
    %v890 = vsub.s32 0, %v889
    %v891 = vrot.slane %v816, %v890
    %v892 = vlaneseq
    %v893 = vshrl.u32 %v892, 7
    %v894 = vsub.s32 1, %v893
    %v895 = vrot.slane %v816, %v894
    %v896 = vlaneseq
    %v897 = vshrl.u32 %v896, 7
    %v898 = vsub.s32 2, %v897
    %v899 = vrot.slane %v816, %v898
    %v900 = vlaneseq
    %v901 = vshrl.u32 %v900, 7
    %v902 = vsub.s32 3, %v901
    %v903 = vrot.slane %v816, %v902
    %v909 = vlaneseq
    %v910 = vshrl.u32 %v909, 7
    %v911 = vsub.s32 0, %v910
    %v912 = vrot.slane %v826, %v911
    %v913 = vlaneseq
    %v914 = vshrl.u32 %v913, 7
    %v915 = vsub.s32 1, %v914
    %v916 = vrot.slane %v826, %v915
    %v917 = vlaneseq
    %v918 = vshrl.u32 %v917, 7
    %v919 = vsub.s32 2, %v918
    %v920 = vrot.slane %v826, %v919
    %v921 = vlaneseq
    %v922 = vshrl.u32 %v921, 7
    %v923 = vsub.s32 3, %v922
    %v924 = vrot.slane %v826, %v923
    %v930 = vlaneseq
    %v931 = vshrl.u32 %v930, 7
    %v932 = vsub.s32 0, %v931
    %v933 = vrot.slane %v836, %v932
    %v934 = vlaneseq
    %v935 = vshrl.u32 %v934, 7
    %v936 = vsub.s32 1, %v935
    %v937 = vrot.slane %v836, %v936
    %v938 = vlaneseq
    %v939 = vshrl.u32 %v938, 7
    %v940 = vsub.s32 2, %v939
    %v941 = vrot.slane %v836, %v940
    %v942 = vlaneseq
    %v943 = vshrl.u32 %v942, 7
    %v944 = vsub.s32 3, %v943
    %v945 = vrot.slane %v836, %v944
    %v951 = vlaneseq
    %v952 = vshrl.u32 %v951, 7
    %v953 = vsub.s32 0, %v952
    %v954 = vrot.slane %v846, %v953
    %v955 = vlaneseq
    %v956 = vshrl.u32 %v955, 7
    %v957 = vsub.s32 1, %v956
    %v958 = vrot.slane %v846, %v957
    %v959 = vlaneseq
    %v960 = vshrl.u32 %v959, 7
    %v961 = vsub.s32 2, %v960
    %v962 = vrot.slane %v846, %v961
    %v963 = vlaneseq
    %v964 = vshrl.u32 %v963, 7
    %v965 = vsub.s32 3, %v964
    %v966 = vrot.slane %v846, %v965
    %v972 = vlaneseq
    %v973 = vshrl.u32 %v972, 7
    %v974 = vsub.s32 0, %v973
    %v975 = vrot.slane %v856, %v974
    %v976 = vlaneseq
    %v977 = vshrl.u32 %v976, 7
    %v978 = vsub.s32 1, %v977
    %v979 = vrot.slane %v856, %v978
    %v980 = vlaneseq
    %v981 = vshrl.u32 %v980, 7
    %v982 = vsub.s32 2, %v981
    %v983 = vrot.slane %v856, %v982
    %v984 = vlaneseq
    %v985 = vshrl.u32 %v984, 7
    %v986 = vsub.s32 3, %v985
    %v987 = vrot.slane %v856, %v986
    %v993 = vlaneseq
    %v994 = vshrl.u32 %v993, 7
    %v995 = vsub.s32 0, %v994
    %v996 = vrot.slane %v866, %v995
    %v997 = vlaneseq
    %v998 = vshrl.u32 %v997, 7
    %v999 = vsub.s32 1, %v998
    %v1000 = vrot.slane %v866, %v999
    %v1001 = vlaneseq
    %v1002 = vshrl.u32 %v1001, 7
    %v1003 = vsub.s32 2, %v1002
    %v1004 = vrot.slane %v866, %v1003
    %v1005 = vlaneseq
    %v1006 = vshrl.u32 %v1005, 7
    %v1007 = vsub.s32 3, %v1006
    %v1008 = vrot.slane %v866, %v1007
    %v1014 = vlaneseq
    %v1015 = vshrl.u32 %v1014, 7
    %v1016 = vsub.s32 0, %v1015
    %v1017 = vrot.slane %v876, %v1016
    %v1018 = vlaneseq
    %v1019 = vshrl.u32 %v1018, 7
    %v1020 = vsub.s32 1, %v1019
    %v1021 = vrot.slane %v876, %v1020
    %v1022 = vlaneseq
    %v1023 = vshrl.u32 %v1022, 7
    %v1024 = vsub.s32 2, %v1023
    %v1025 = vrot.slane %v876, %v1024
    %v1026 = vlaneseq
    %v1027 = vshrl.u32 %v1026, 7
    %v1028 = vsub.s32 3, %v1027
    %v1029 = vrot.slane %v876, %v1028
    %v1035 = vlaneseq
    %v1036 = vshrl.u32 %v1035, 7
    %v1037 = vsub.s32 0, %v1036
    %v1038 = vrot.slane %v886, %v1037
    %v1039 = vlaneseq
    %v1040 = vshrl.u32 %v1039, 7
    %v1041 = vsub.s32 1, %v1040
    %v1042 = vrot.slane %v886, %v1041
    %v1043 = vlaneseq
    %v1044 = vshrl.u32 %v1043, 7
    %v1045 = vsub.s32 2, %v1044
    %v1046 = vrot.slane %v886, %v1045
    %v1047 = vlaneseq
    %v1048 = vshrl.u32 %v1047, 7
    %v1049 = vsub.s32 3, %v1048
    %v1050 = vrot.slane %v886, %v1049
    %v1055 = vsel %vm313, %v891, %v912
    %v1056 = vsel %vm313, %v895, %v916
    %v1057 = vsel %vm313, %v899, %v920
    %v1058 = vsel %vm313, %v903, %v924
    %v1059 = vsel %vm317, %v1055, %v933
    %v1060 = vsel %vm317, %v1056, %v937
    %v1061 = vsel %vm317, %v1057, %v941
    %v1062 = vsel %vm317, %v1058, %v945
    %v1063 = vsel %vm321, %v1059, %v954
    %v1064 = vsel %vm321, %v1060, %v958
    %v1065 = vsel %vm321, %v1061, %v962
    %v1066 = vsel %vm321, %v1062, %v966
    %v1067 = vsel %vm325, %v1063, %v975
    %v1068 = vsel %vm325, %v1064, %v979
    %v1069 = vsel %vm325, %v1065, %v983
    %v1070 = vsel %vm325, %v1066, %v987
    %v1071 = vsel %vm329, %v1067, %v996
    %v1072 = vsel %vm329, %v1068, %v1000
    %v1073 = vsel %vm329, %v1069, %v1004
    %v1074 = vsel %vm329, %v1070, %v1008
    %v1075 = vsel %vm333, %v1071, %v1017
    %v1076 = vsel %vm333, %v1072, %v1021
    %v1077 = vsel %vm333, %v1073, %v1025
    %v1078 = vsel %vm333, %v1074, %v1029
    %v1079 = vsel %vm337, %v1075, %v1038
    %v1080 = vsel %vm337, %v1076, %v1042
    %v1081 = vsel %vm337, %v1077, %v1046
    %v1082 = vsel %vm337, %v1078, %v1050
    %v1084 = vsel %vm633, %v806, 0
    %1086 = vmatprep.subr.mxu0 0.0
    %1087 = vmatpush1.msra.mxu0 0.0
    %1088 = vmatprep.subr.mxu0 0.0
    %1089 = vmatpush1.msra.mxu0 0.0
    %1090 = vmatprep.subr.mxu0 0.0
    %1091 = vmatpush1.msra.mxu0 0.0
    %1092 = vmatprep.subr.mxu0 0.0
    %1093 = vmatpush1.msra.mxu0 0.0
    %1094 = vmatprep.subr.mxu0 0.0
    %1095 = vmatpush1.msra.mxu0 0.0
    %1096 = vmatprep.subr.mxu0 0.0
    %1097 = vmatpush1.msra.mxu0 0.0
    %1098 = vmatprep.subr.mxu0 0.0
    %1099 = vmatpush1.msra.mxu0 0.0
    %1100 = vmatprep.subr.mxu0 0.0
    %1101 = vmatpush1.msra.mxu0 0.0
    %1102 = vmatprep.subr.mxu0 %v102
    %1103 = vmatpush1.msra.mxu0 %v101
    %1104 = vmatprep.subr.mxu0 %v98
    %1105 = vmatpush1.msra.mxu0 %v97
    %1106 = vmatprep.subr.mxu0 %v94
    %1107 = vmatpush1.msra.mxu0 %v93
    %1108 = vmatprep.subr.mxu0 %v90
    %1109 = vmatpush1.msra.mxu0 %v89
    %1110 = vmatprep.subr.mxu0 %v86
    %1111 = vmatpush1.msra.mxu0 %v85
    %1112 = vmatprep.subr.mxu0 %v82
    %1113 = vmatpush1.msra.mxu0 %v81
    %1114 = vmatprep.subr.mxu0 %v78
    %1115 = vmatpush1.msra.mxu0 %v77
    %1116 = vmatprep.subr.mxu0 %v74
    %1117 = vmatpush1.msra.mxu0 %v73
    %1118 = vmatprep.subr.mxu0 0.0
    %1119 = vmatpush2.msra.mxu0 0.0
    %1120 = vmatprep.subr.mxu0 0.0
    %1121 = vmatpush2.msra.mxu0 0.0
    %1122 = vmatprep.subr.mxu0 0.0
    %1123 = vmatpush2.msra.mxu0 0.0
    %1124 = vmatprep.subr.mxu0 0.0
    %1125 = vmatpush2.msra.mxu0 0.0
    %1126 = vmatprep.subr.mxu0 0.0
    %1127 = vmatpush2.msra.mxu0 0.0
    %1128 = vmatprep.subr.mxu0 0.0
    %1129 = vmatpush2.msra.mxu0 0.0
    %1130 = vmatprep.subr.mxu0 0.0
    %1131 = vmatpush2.msra.mxu0 0.0
    %1132 = vmatprep.subr.mxu0 0.0
    %1133 = vmatpush2.msra.mxu0 0.0
    %1134 = vmatprep.subr.mxu0 0.0
    %1135 = vmatpush2.msra.mxu0 0.0
    %1136 = vmatprep.subr.mxu0 0.0
    %1137 = vmatpush2.msra.mxu0 0.0
    %1138 = vmatprep.subr.mxu0 0.0
    %1139 = vmatpush2.msra.mxu0 0.0
    %1140 = vmatprep.subr.mxu0 0.0
    %1141 = vmatpush2.msra.mxu0 0.0
    %1142 = vmatprep.subr.mxu0 0.0
    %1143 = vmatpush2.msra.mxu0 0.0
    %1144 = vmatprep.subr.mxu0 0.0
    %1145 = vmatpush2.msra.mxu0 0.0
    %1146 = vmatprep.subr.mxu0 0.0
    %1147 = vmatpush2.msra.mxu0 0.0
    %1148 = vmatprep.subr.mxu0 0.0
    %1149 = vmatpush2.msra.mxu0 0.0
    %1150 = vmatprep.mubr.f32.mxu0 0.0
    %1151 = vmatmul.mubr.f32.gmra.mxu0 %v1084
    %v1152 = vpop.f32.mrf.mxu0
    %v1153 = vadd.f32 0.0, %v1152
    %v1154 = vpop.f32.mrf.mxu0
    %v1155 = vadd.f32 0.0, %v1154
    %1156 = vdwg.mxu0
    %1157 = vmatprep.subr.mxu0 0.0
    %1158 = vmatpush1.msra.mxu0 0.0
    %1159 = vmatprep.subr.mxu0 0.0
    %1160 = vmatpush1.msra.mxu0 0.0
    %1161 = vmatprep.subr.mxu0 0.0
    %1162 = vmatpush1.msra.mxu0 0.0
    %1163 = vmatprep.subr.mxu0 0.0
    %1164 = vmatpush1.msra.mxu0 0.0
    %1165 = vmatprep.subr.mxu0 0.0
    %1166 = vmatpush1.msra.mxu0 0.0
    %1167 = vmatprep.subr.mxu0 0.0
    %1168 = vmatpush1.msra.mxu0 0.0
    %1169 = vmatprep.subr.mxu0 0.0
    %1170 = vmatpush1.msra.mxu0 0.0
    %1171 = vmatprep.subr.mxu0 0.0
    %1172 = vmatpush1.msra.mxu0 0.0
    %1173 = vmatprep.subr.mxu0 %v104
    %1174 = vmatpush1.msra.mxu0 %v103
    %1175 = vmatprep.subr.mxu0 %v100
    %1176 = vmatpush1.msra.mxu0 %v99
    %1177 = vmatprep.subr.mxu0 %v96
    %1178 = vmatpush1.msra.mxu0 %v95
    %1179 = vmatprep.subr.mxu0 %v92
    %1180 = vmatpush1.msra.mxu0 %v91
    %1181 = vmatprep.subr.mxu0 %v88
    %1182 = vmatpush1.msra.mxu0 %v87
    %1183 = vmatprep.subr.mxu0 %v84
    %1184 = vmatpush1.msra.mxu0 %v83
    %1185 = vmatprep.subr.mxu0 %v80
    %1186 = vmatpush1.msra.mxu0 %v79
    %1187 = vmatprep.subr.mxu0 %v76
    %1188 = vmatpush1.msra.mxu0 %v75
    %1189 = vmatprep.subr.mxu0 0.0
    %1190 = vmatpush2.msra.mxu0 0.0
    %1191 = vmatprep.subr.mxu0 0.0
    %1192 = vmatpush2.msra.mxu0 0.0
    %1193 = vmatprep.subr.mxu0 0.0
    %1194 = vmatpush2.msra.mxu0 0.0
    %1195 = vmatprep.subr.mxu0 0.0
    %1196 = vmatpush2.msra.mxu0 0.0
    %1197 = vmatprep.subr.mxu0 0.0
    %1198 = vmatpush2.msra.mxu0 0.0
    %1199 = vmatprep.subr.mxu0 0.0
    %1200 = vmatpush2.msra.mxu0 0.0
    %1201 = vmatprep.subr.mxu0 0.0
    %1202 = vmatpush2.msra.mxu0 0.0
    %1203 = vmatprep.subr.mxu0 0.0
    %1204 = vmatpush2.msra.mxu0 0.0
    %1205 = vmatprep.subr.mxu0 0.0
    %1206 = vmatpush2.msra.mxu0 0.0
    %1207 = vmatprep.subr.mxu0 0.0
    %1208 = vmatpush2.msra.mxu0 0.0
    %1209 = vmatprep.subr.mxu0 0.0
    %1210 = vmatpush2.msra.mxu0 0.0
    %1211 = vmatprep.subr.mxu0 0.0
    %1212 = vmatpush2.msra.mxu0 0.0
    %1213 = vmatprep.subr.mxu0 0.0
    %1214 = vmatpush2.msra.mxu0 0.0
    %1215 = vmatprep.subr.mxu0 0.0
    %1216 = vmatpush2.msra.mxu0 0.0
    %1217 = vmatprep.subr.mxu0 0.0
    %1218 = vmatpush2.msra.mxu0 0.0
    %1219 = vmatprep.subr.mxu0 0.0
    %1220 = vmatpush2.msra.mxu0 0.0
    %1221 = vmatprep.mubr.f32.mxu0 0.0
    %1222 = vmatmul.mubr.f32.gmra.mxu0 %v1084
    %v1223 = vpop.f32.mrf.mxu0
    %v1224 = vadd.f32 0.0, %v1223
    %v1225 = vpop.f32.mrf.mxu0
    %v1226 = vadd.f32 0.0, %v1225
    %1227 = vdwg.mxu0
    %v1228 = vadd.f32 %v1079, %v1153
    %v1229 = vadd.f32 %v1080, %v1155
    %v1230 = vadd.f32 %v1081, %v1224
    %v1231 = vadd.f32 %v1082, %v1226
    %v1232 = vxor.u32 %v1228, 2147483648
    %v1233 = vmul.f32 %v1232, 1.442695
    %v1234 = vpow.pop %v1233
    %v1235 = vadd.f32 %v1234, 1.0
    %v1236 = vrcp.pop %v1235
    %v1237 = vmul.f32 1.0, %v1236
    %v1238 = vxor.u32 %v1229, 2147483648
    %v1239 = vmul.f32 %v1238, 1.442695
    %v1240 = vpow.pop %v1239
    %v1241 = vadd.f32 %v1240, 1.0
    %v1242 = vrcp.pop %v1241
    %v1243 = vmul.f32 1.0, %v1242
    %v1244 = vtanh.pop %v1230
    %v1245 = vxor.u32 %v1231, 2147483648
    %v1246 = vmul.f32 %v1245, 1.442695
    %v1247 = vpow.pop %v1246
    %v1248 = vadd.f32 %v1247, 1.0
    %v1249 = vrcp.pop %v1248
    %v1250 = vmul.f32 1.0, %v1249
    %v1251 = vmul.f32 %v1243, %v804
    %v1252 = vmul.f32 %v1237, %v1244
    %v1253 = vadd.f32 %v1251, %v1252
    %v1254 = vtanh.pop %v1253
    %v1255 = vmul.f32 %v1250, %v1254
    %s1256 = sld [smem:[#allocation2 + $0x3]]
    %s1257 = sshra.s32 %s1256, 3
    %s1258 = sand.u32 %s1256, 7
    %s1259 = sshra.s32 %s1256, 3
    %s1260 = sand.u32 %s1256, 7
    %s1261 = smul.u32 %s1257, 4
    %s1262 = smul.u32 %s1261, 8
    %s1263 = sadd.s32 %s1262, %s1260
    %s1264 = scalar_lea.vmem [#allocation6], %s1263
    %v1265 = vld [vmem:[%s1264] ss:$8 sm:$0xf]
    %s1266 = sld [smem:[#allocation2 + $0x83]]
    %s1267 = sshra.s32 %s1266, 3
    %s1268 = sand.u32 %s1266, 7
    %s1269 = sshra.s32 %s1266, 3
    %s1270 = sand.u32 %s1266, 7
    %s1271 = smul.u32 %s1267, 4
    %s1272 = smul.u32 %s1271, 8
    %s1273 = sadd.s32 %s1272, %s1270
    %s1274 = scalar_lea.vmem [#allocation6], %s1273
    %v1275 = vld [vmem:[%s1274] ss:$8 sm:$0xf]
    %s1276 = sld [smem:[#allocation2 + $0x103]]
    %s1277 = sshra.s32 %s1276, 3
    %s1278 = sand.u32 %s1276, 7
    %s1279 = sshra.s32 %s1276, 3
    %s1280 = sand.u32 %s1276, 7
    %s1281 = smul.u32 %s1277, 4
    %s1282 = smul.u32 %s1281, 8
    %s1283 = sadd.s32 %s1282, %s1280
    %s1284 = scalar_lea.vmem [#allocation6], %s1283
    %v1285 = vld [vmem:[%s1284] ss:$8 sm:$0xf]
    %s1286 = sld [smem:[#allocation2 + $0x183]]
    %s1287 = sshra.s32 %s1286, 3
    %s1288 = sand.u32 %s1286, 7
    %s1289 = sshra.s32 %s1286, 3
    %s1290 = sand.u32 %s1286, 7
    %s1291 = smul.u32 %s1287, 4
    %s1292 = smul.u32 %s1291, 8
    %s1293 = sadd.s32 %s1292, %s1290
    %s1294 = scalar_lea.vmem [#allocation6], %s1293
    %v1295 = vld [vmem:[%s1294] ss:$8 sm:$0xf]
    %s1296 = sld [smem:[#allocation2 + $0x203]]
    %s1297 = sshra.s32 %s1296, 3
    %s1298 = sand.u32 %s1296, 7
    %s1299 = sshra.s32 %s1296, 3
    %s1300 = sand.u32 %s1296, 7
    %s1301 = smul.u32 %s1297, 4
    %s1302 = smul.u32 %s1301, 8
    %s1303 = sadd.s32 %s1302, %s1300
    %s1304 = scalar_lea.vmem [#allocation6], %s1303
    %v1305 = vld [vmem:[%s1304] ss:$8 sm:$0xf]
    %s1306 = sld [smem:[#allocation2 + $0x283]]
    %s1307 = sshra.s32 %s1306, 3
    %s1308 = sand.u32 %s1306, 7
    %s1309 = sshra.s32 %s1306, 3
    %s1310 = sand.u32 %s1306, 7
    %s1311 = smul.u32 %s1307, 4
    %s1312 = smul.u32 %s1311, 8
    %s1313 = sadd.s32 %s1312, %s1310
    %s1314 = scalar_lea.vmem [#allocation6], %s1313
    %v1315 = vld [vmem:[%s1314] ss:$8 sm:$0xf]
    %s1316 = sld [smem:[#allocation2 + $0x303]]
    %s1317 = sshra.s32 %s1316, 3
    %s1318 = sand.u32 %s1316, 7
    %s1319 = sshra.s32 %s1316, 3
    %s1320 = sand.u32 %s1316, 7
    %s1321 = smul.u32 %s1317, 4
    %s1322 = smul.u32 %s1321, 8
    %s1323 = sadd.s32 %s1322, %s1320
    %s1324 = scalar_lea.vmem [#allocation6], %s1323
    %v1325 = vld [vmem:[%s1324] ss:$8 sm:$0xf]
    %s1326 = sld [smem:[#allocation2 + $0x383]]
    %s1327 = sshra.s32 %s1326, 3
    %s1328 = sand.u32 %s1326, 7
    %s1329 = sshra.s32 %s1326, 3
    %s1330 = sand.u32 %s1326, 7
    %s1331 = smul.u32 %s1327, 4
    %s1332 = smul.u32 %s1331, 8
    %s1333 = sadd.s32 %s1332, %s1330
    %s1334 = scalar_lea.vmem [#allocation6], %s1333
    %v1335 = vld [vmem:[%s1334] ss:$8 sm:$0xf]
    %v1337 = vlaneseq
    %v1338 = vshrl.u32 %v1337, 7
    %v1339 = vsub.s32 0, %v1338
    %v1340 = vrot.slane %v1265, %v1339
    %v1341 = vlaneseq
    %v1342 = vshrl.u32 %v1341, 7
    %v1343 = vsub.s32 1, %v1342
    %v1344 = vrot.slane %v1265, %v1343
    %v1345 = vlaneseq
    %v1346 = vshrl.u32 %v1345, 7
    %v1347 = vsub.s32 2, %v1346
    %v1348 = vrot.slane %v1265, %v1347
    %v1349 = vlaneseq
    %v1350 = vshrl.u32 %v1349, 7
    %v1351 = vsub.s32 3, %v1350
    %v1352 = vrot.slane %v1265, %v1351
    %v1358 = vlaneseq
    %v1359 = vshrl.u32 %v1358, 7
    %v1360 = vsub.s32 0, %v1359
    %v1361 = vrot.slane %v1275, %v1360
    %v1362 = vlaneseq
    %v1363 = vshrl.u32 %v1362, 7
    %v1364 = vsub.s32 1, %v1363
    %v1365 = vrot.slane %v1275, %v1364
    %v1366 = vlaneseq
    %v1367 = vshrl.u32 %v1366, 7
    %v1368 = vsub.s32 2, %v1367
    %v1369 = vrot.slane %v1275, %v1368
    %v1370 = vlaneseq
    %v1371 = vshrl.u32 %v1370, 7
    %v1372 = vsub.s32 3, %v1371
    %v1373 = vrot.slane %v1275, %v1372
    %v1379 = vlaneseq
    %v1380 = vshrl.u32 %v1379, 7
    %v1381 = vsub.s32 0, %v1380
    %v1382 = vrot.slane %v1285, %v1381
    %v1383 = vlaneseq
    %v1384 = vshrl.u32 %v1383, 7
    %v1385 = vsub.s32 1, %v1384
    %v1386 = vrot.slane %v1285, %v1385
    %v1387 = vlaneseq
    %v1388 = vshrl.u32 %v1387, 7
    %v1389 = vsub.s32 2, %v1388
    %v1390 = vrot.slane %v1285, %v1389
    %v1391 = vlaneseq
    %v1392 = vshrl.u32 %v1391, 7
    %v1393 = vsub.s32 3, %v1392
    %v1394 = vrot.slane %v1285, %v1393
    %v1400 = vlaneseq
    %v1401 = vshrl.u32 %v1400, 7
    %v1402 = vsub.s32 0, %v1401
    %v1403 = vrot.slane %v1295, %v1402
    %v1404 = vlaneseq
    %v1405 = vshrl.u32 %v1404, 7
    %v1406 = vsub.s32 1, %v1405
    %v1407 = vrot.slane %v1295, %v1406
    %v1408 = vlaneseq
    %v1409 = vshrl.u32 %v1408, 7
    %v1410 = vsub.s32 2, %v1409
    %v1411 = vrot.slane %v1295, %v1410
    %v1412 = vlaneseq
    %v1413 = vshrl.u32 %v1412, 7
    %v1414 = vsub.s32 3, %v1413
    %v1415 = vrot.slane %v1295, %v1414
    %v1421 = vlaneseq
    %v1422 = vshrl.u32 %v1421, 7
    %v1423 = vsub.s32 0, %v1422
    %v1424 = vrot.slane %v1305, %v1423
    %v1425 = vlaneseq
    %v1426 = vshrl.u32 %v1425, 7
    %v1427 = vsub.s32 1, %v1426
    %v1428 = vrot.slane %v1305, %v1427
    %v1429 = vlaneseq
    %v1430 = vshrl.u32 %v1429, 7
    %v1431 = vsub.s32 2, %v1430
    %v1432 = vrot.slane %v1305, %v1431
    %v1433 = vlaneseq
    %v1434 = vshrl.u32 %v1433, 7
    %v1435 = vsub.s32 3, %v1434
    %v1436 = vrot.slane %v1305, %v1435
    %v1442 = vlaneseq
    %v1443 = vshrl.u32 %v1442, 7
    %v1444 = vsub.s32 0, %v1443
    %v1445 = vrot.slane %v1315, %v1444
    %v1446 = vlaneseq
    %v1447 = vshrl.u32 %v1446, 7
    %v1448 = vsub.s32 1, %v1447
    %v1449 = vrot.slane %v1315, %v1448
    %v1450 = vlaneseq
    %v1451 = vshrl.u32 %v1450, 7
    %v1452 = vsub.s32 2, %v1451
    %v1453 = vrot.slane %v1315, %v1452
    %v1454 = vlaneseq
    %v1455 = vshrl.u32 %v1454, 7
    %v1456 = vsub.s32 3, %v1455
    %v1457 = vrot.slane %v1315, %v1456
    %v1463 = vlaneseq
    %v1464 = vshrl.u32 %v1463, 7
    %v1465 = vsub.s32 0, %v1464
    %v1466 = vrot.slane %v1325, %v1465
    %v1467 = vlaneseq
    %v1468 = vshrl.u32 %v1467, 7
    %v1469 = vsub.s32 1, %v1468
    %v1470 = vrot.slane %v1325, %v1469
    %v1471 = vlaneseq
    %v1472 = vshrl.u32 %v1471, 7
    %v1473 = vsub.s32 2, %v1472
    %v1474 = vrot.slane %v1325, %v1473
    %v1475 = vlaneseq
    %v1476 = vshrl.u32 %v1475, 7
    %v1477 = vsub.s32 3, %v1476
    %v1478 = vrot.slane %v1325, %v1477
    %v1484 = vlaneseq
    %v1485 = vshrl.u32 %v1484, 7
    %v1486 = vsub.s32 0, %v1485
    %v1487 = vrot.slane %v1335, %v1486
    %v1488 = vlaneseq
    %v1489 = vshrl.u32 %v1488, 7
    %v1490 = vsub.s32 1, %v1489
    %v1491 = vrot.slane %v1335, %v1490
    %v1492 = vlaneseq
    %v1493 = vshrl.u32 %v1492, 7
    %v1494 = vsub.s32 2, %v1493
    %v1495 = vrot.slane %v1335, %v1494
    %v1496 = vlaneseq
    %v1497 = vshrl.u32 %v1496, 7
    %v1498 = vsub.s32 3, %v1497
    %v1499 = vrot.slane %v1335, %v1498
    %v1504 = vsel %vm313, %v1340, %v1361
    %v1505 = vsel %vm313, %v1344, %v1365
    %v1506 = vsel %vm313, %v1348, %v1369
    %v1507 = vsel %vm313, %v1352, %v1373
    %v1508 = vsel %vm317, %v1504, %v1382
    %v1509 = vsel %vm317, %v1505, %v1386
    %v1510 = vsel %vm317, %v1506, %v1390
    %v1511 = vsel %vm317, %v1507, %v1394
    %v1512 = vsel %vm321, %v1508, %v1403
    %v1513 = vsel %vm321, %v1509, %v1407
    %v1514 = vsel %vm321, %v1510, %v1411
    %v1515 = vsel %vm321, %v1511, %v1415
    %v1516 = vsel %vm325, %v1512, %v1424
    %v1517 = vsel %vm325, %v1513, %v1428
    %v1518 = vsel %vm325, %v1514, %v1432
    %v1519 = vsel %vm325, %v1515, %v1436
    %v1520 = vsel %vm329, %v1516, %v1445
    %v1521 = vsel %vm329, %v1517, %v1449
    %v1522 = vsel %vm329, %v1518, %v1453
    %v1523 = vsel %vm329, %v1519, %v1457
    %v1524 = vsel %vm333, %v1520, %v1466
    %v1525 = vsel %vm333, %v1521, %v1470
    %v1526 = vsel %vm333, %v1522, %v1474
    %v1527 = vsel %vm333, %v1523, %v1478
    %v1528 = vsel %vm337, %v1524, %v1487
    %v1529 = vsel %vm337, %v1525, %v1491
    %v1530 = vsel %vm337, %v1526, %v1495
    %v1531 = vsel %vm337, %v1527, %v1499
    %v1533 = vsel %vm633, %v1255, 0
    %1535 = vmatprep.subr.mxu0 0.0
    %1536 = vmatpush1.msra.mxu0 0.0
    %1537 = vmatprep.subr.mxu0 0.0
    %1538 = vmatpush1.msra.mxu0 0.0
    %1539 = vmatprep.subr.mxu0 0.0
    %1540 = vmatpush1.msra.mxu0 0.0
    %1541 = vmatprep.subr.mxu0 0.0
    %1542 = vmatpush1.msra.mxu0 0.0
    %1543 = vmatprep.subr.mxu0 0.0
    %1544 = vmatpush1.msra.mxu0 0.0
    %1545 = vmatprep.subr.mxu0 0.0
    %1546 = vmatpush1.msra.mxu0 0.0
    %1547 = vmatprep.subr.mxu0 0.0
    %1548 = vmatpush1.msra.mxu0 0.0
    %1549 = vmatprep.subr.mxu0 0.0
    %1550 = vmatpush1.msra.mxu0 0.0
    %1551 = vmatprep.subr.mxu0 %v102
    %1552 = vmatpush1.msra.mxu0 %v101
    %1553 = vmatprep.subr.mxu0 %v98
    %1554 = vmatpush1.msra.mxu0 %v97
    %1555 = vmatprep.subr.mxu0 %v94
    %1556 = vmatpush1.msra.mxu0 %v93
    %1557 = vmatprep.subr.mxu0 %v90
    %1558 = vmatpush1.msra.mxu0 %v89
    %1559 = vmatprep.subr.mxu0 %v86
    %1560 = vmatpush1.msra.mxu0 %v85
    %1561 = vmatprep.subr.mxu0 %v82
    %1562 = vmatpush1.msra.mxu0 %v81
    %1563 = vmatprep.subr.mxu0 %v78
    %1564 = vmatpush1.msra.mxu0 %v77
    %1565 = vmatprep.subr.mxu0 %v74
    %1566 = vmatpush1.msra.mxu0 %v73
    %1567 = vmatprep.subr.mxu0 0.0
    %1568 = vmatpush2.msra.mxu0 0.0
    %1569 = vmatprep.subr.mxu0 0.0
    %1570 = vmatpush2.msra.mxu0 0.0
    %1571 = vmatprep.subr.mxu0 0.0
    %1572 = vmatpush2.msra.mxu0 0.0
    %1573 = vmatprep.subr.mxu0 0.0
    %1574 = vmatpush2.msra.mxu0 0.0
    %1575 = vmatprep.subr.mxu0 0.0
    %1576 = vmatpush2.msra.mxu0 0.0
    %1577 = vmatprep.subr.mxu0 0.0
    %1578 = vmatpush2.msra.mxu0 0.0
    %1579 = vmatprep.subr.mxu0 0.0
    %1580 = vmatpush2.msra.mxu0 0.0
    %1581 = vmatprep.subr.mxu0 0.0
    %1582 = vmatpush2.msra.mxu0 0.0
    %1583 = vmatprep.subr.mxu0 0.0
    %1584 = vmatpush2.msra.mxu0 0.0
    %1585 = vmatprep.subr.mxu0 0.0
    %1586 = vmatpush2.msra.mxu0 0.0
    %1587 = vmatprep.subr.mxu0 0.0
    %1588 = vmatpush2.msra.mxu0 0.0
    %1589 = vmatprep.subr.mxu0 0.0
    %1590 = vmatpush2.msra.mxu0 0.0
    %1591 = vmatprep.subr.mxu0 0.0
    %1592 = vmatpush2.msra.mxu0 0.0
    %1593 = vmatprep.subr.mxu0 0.0
    %1594 = vmatpush2.msra.mxu0 0.0
    %1595 = vmatprep.subr.mxu0 0.0
    %1596 = vmatpush2.msra.mxu0 0.0
    %1597 = vmatprep.subr.mxu0 0.0
    %1598 = vmatpush2.msra.mxu0 0.0
    %1599 = vmatprep.mubr.f32.mxu0 0.0
    %1600 = vmatmul.mubr.f32.gmra.mxu0 %v1533
    %v1601 = vpop.f32.mrf.mxu0
    %v1602 = vadd.f32 0.0, %v1601
    %v1603 = vpop.f32.mrf.mxu0
    %v1604 = vadd.f32 0.0, %v1603
    %1605 = vdwg.mxu0
    %1606 = vmatprep.subr.mxu0 0.0
    %1607 = vmatpush1.msra.mxu0 0.0
    %1608 = vmatprep.subr.mxu0 0.0
    %1609 = vmatpush1.msra.mxu0 0.0
    %1610 = vmatprep.subr.mxu0 0.0
    %1611 = vmatpush1.msra.mxu0 0.0
    %1612 = vmatprep.subr.mxu0 0.0
    %1613 = vmatpush1.msra.mxu0 0.0
    %1614 = vmatprep.subr.mxu0 0.0
    %1615 = vmatpush1.msra.mxu0 0.0
    %1616 = vmatprep.subr.mxu0 0.0
    %1617 = vmatpush1.msra.mxu0 0.0
    %1618 = vmatprep.subr.mxu0 0.0
    %1619 = vmatpush1.msra.mxu0 0.0
    %1620 = vmatprep.subr.mxu0 0.0
    %1621 = vmatpush1.msra.mxu0 0.0
    %1622 = vmatprep.subr.mxu0 %v104
    %1623 = vmatpush1.msra.mxu0 %v103
    %1624 = vmatprep.subr.mxu0 %v100
    %1625 = vmatpush1.msra.mxu0 %v99
    %1626 = vmatprep.subr.mxu0 %v96
    %1627 = vmatpush1.msra.mxu0 %v95
    %1628 = vmatprep.subr.mxu0 %v92
    %1629 = vmatpush1.msra.mxu0 %v91
    %1630 = vmatprep.subr.mxu0 %v88
    %1631 = vmatpush1.msra.mxu0 %v87
    %1632 = vmatprep.subr.mxu0 %v84
    %1633 = vmatpush1.msra.mxu0 %v83
    %1634 = vmatprep.subr.mxu0 %v80
    %1635 = vmatpush1.msra.mxu0 %v79
    %1636 = vmatprep.subr.mxu0 %v76
    %1637 = vmatpush1.msra.mxu0 %v75
    %1638 = vmatprep.subr.mxu0 0.0
    %1639 = vmatpush2.msra.mxu0 0.0
    %1640 = vmatprep.subr.mxu0 0.0
    %1641 = vmatpush2.msra.mxu0 0.0
    %1642 = vmatprep.subr.mxu0 0.0
    %1643 = vmatpush2.msra.mxu0 0.0
    %1644 = vmatprep.subr.mxu0 0.0
    %1645 = vmatpush2.msra.mxu0 0.0
    %1646 = vmatprep.subr.mxu0 0.0
    %1647 = vmatpush2.msra.mxu0 0.0
    %1648 = vmatprep.subr.mxu0 0.0
    %1649 = vmatpush2.msra.mxu0 0.0
    %1650 = vmatprep.subr.mxu0 0.0
    %1651 = vmatpush2.msra.mxu0 0.0
    %1652 = vmatprep.subr.mxu0 0.0
    %1653 = vmatpush2.msra.mxu0 0.0
    %1654 = vmatprep.subr.mxu0 0.0
    %1655 = vmatpush2.msra.mxu0 0.0
    %1656 = vmatprep.subr.mxu0 0.0
    %1657 = vmatpush2.msra.mxu0 0.0
    %1658 = vmatprep.subr.mxu0 0.0
    %1659 = vmatpush2.msra.mxu0 0.0
    %1660 = vmatprep.subr.mxu0 0.0
    %1661 = vmatpush2.msra.mxu0 0.0
    %1662 = vmatprep.subr.mxu0 0.0
    %1663 = vmatpush2.msra.mxu0 0.0
    %1664 = vmatprep.subr.mxu0 0.0
    %1665 = vmatpush2.msra.mxu0 0.0
    %1666 = vmatprep.subr.mxu0 0.0
    %1667 = vmatpush2.msra.mxu0 0.0
    %1668 = vmatprep.subr.mxu0 0.0
    %1669 = vmatpush2.msra.mxu0 0.0
    %1670 = vmatprep.mubr.f32.mxu0 0.0
    %1671 = vmatmul.mubr.f32.gmra.mxu0 %v1533
    %v1672 = vpop.f32.mrf.mxu0
    %v1673 = vadd.f32 0.0, %v1672
    %v1674 = vpop.f32.mrf.mxu0
    %v1675 = vadd.f32 0.0, %v1674
    %1676 = vdwg.mxu0
    %v1677 = vadd.f32 %v1528, %v1602
    %v1678 = vadd.f32 %v1529, %v1604
    %v1679 = vadd.f32 %v1530, %v1673
    %v1680 = vadd.f32 %v1531, %v1675
    %v1681 = vxor.u32 %v1677, 2147483648
    %v1682 = vmul.f32 %v1681, 1.442695
    %v1683 = vpow.pop %v1682
    %v1684 = vadd.f32 %v1683, 1.0
    %v1685 = vrcp.pop %v1684
    %v1686 = vmul.f32 1.0, %v1685
    %v1687 = vxor.u32 %v1678, 2147483648
    %v1688 = vmul.f32 %v1687, 1.442695
    %v1689 = vpow.pop %v1688
    %v1690 = vadd.f32 %v1689, 1.0
    %v1691 = vrcp.pop %v1690
    %v1692 = vmul.f32 1.0, %v1691
    %v1693 = vtanh.pop %v1679
    %v1694 = vxor.u32 %v1680, 2147483648
    %v1695 = vmul.f32 %v1694, 1.442695
    %v1696 = vpow.pop %v1695
    %v1697 = vadd.f32 %v1696, 1.0
    %v1698 = vrcp.pop %v1697
    %v1699 = vmul.f32 1.0, %v1698
    %v1700 = vmul.f32 %v1692, %v1253
    %v1701 = vmul.f32 %v1686, %v1693
    %v1702 = vadd.f32 %v1700, %v1701
    %v1703 = vtanh.pop %v1702
    %v1704 = vmul.f32 %v1699, %v1703
    %s1705 = sld [smem:[#allocation2 + $0x4]]
    %s1706 = sshra.s32 %s1705, 3
    %s1707 = sand.u32 %s1705, 7
    %s1708 = sshra.s32 %s1705, 3
    %s1709 = sand.u32 %s1705, 7
    %s1710 = smul.u32 %s1706, 4
    %s1711 = smul.u32 %s1710, 8
    %s1712 = sadd.s32 %s1711, %s1709
    %s1713 = scalar_lea.vmem [#allocation6], %s1712
    %v1714 = vld [vmem:[%s1713] ss:$8 sm:$0xf]
    %s1715 = sld [smem:[#allocation2 + $0x84]]
    %s1716 = sshra.s32 %s1715, 3
    %s1717 = sand.u32 %s1715, 7
    %s1718 = sshra.s32 %s1715, 3
    %s1719 = sand.u32 %s1715, 7
    %s1720 = smul.u32 %s1716, 4
    %s1721 = smul.u32 %s1720, 8
    %s1722 = sadd.s32 %s1721, %s1719
    %s1723 = scalar_lea.vmem [#allocation6], %s1722
    %v1724 = vld [vmem:[%s1723] ss:$8 sm:$0xf]
    %s1725 = sld [smem:[#allocation2 + $0x104]]
    %s1726 = sshra.s32 %s1725, 3
    %s1727 = sand.u32 %s1725, 7
    %s1728 = sshra.s32 %s1725, 3
    %s1729 = sand.u32 %s1725, 7
    %s1730 = smul.u32 %s1726, 4
    %s1731 = smul.u32 %s1730, 8
    %s1732 = sadd.s32 %s1731, %s1729
    %s1733 = scalar_lea.vmem [#allocation6], %s1732
    %v1734 = vld [vmem:[%s1733] ss:$8 sm:$0xf]
    %s1735 = sld [smem:[#allocation2 + $0x184]]
    %s1736 = sshra.s32 %s1735, 3
    %s1737 = sand.u32 %s1735, 7
    %s1738 = sshra.s32 %s1735, 3
    %s1739 = sand.u32 %s1735, 7
    %s1740 = smul.u32 %s1736, 4
    %s1741 = smul.u32 %s1740, 8
    %s1742 = sadd.s32 %s1741, %s1739
    %s1743 = scalar_lea.vmem [#allocation6], %s1742
    %v1744 = vld [vmem:[%s1743] ss:$8 sm:$0xf]
    %s1745 = sld [smem:[#allocation2 + $0x204]]
    %s1746 = sshra.s32 %s1745, 3
    %s1747 = sand.u32 %s1745, 7
    %s1748 = sshra.s32 %s1745, 3
    %s1749 = sand.u32 %s1745, 7
    %s1750 = smul.u32 %s1746, 4
    %s1751 = smul.u32 %s1750, 8
    %s1752 = sadd.s32 %s1751, %s1749
    %s1753 = scalar_lea.vmem [#allocation6], %s1752
    %v1754 = vld [vmem:[%s1753] ss:$8 sm:$0xf]
    %s1755 = sld [smem:[#allocation2 + $0x284]]
    %s1756 = sshra.s32 %s1755, 3
    %s1757 = sand.u32 %s1755, 7
    %s1758 = sshra.s32 %s1755, 3
    %s1759 = sand.u32 %s1755, 7
    %s1760 = smul.u32 %s1756, 4
    %s1761 = smul.u32 %s1760, 8
    %s1762 = sadd.s32 %s1761, %s1759
    %s1763 = scalar_lea.vmem [#allocation6], %s1762
    %v1764 = vld [vmem:[%s1763] ss:$8 sm:$0xf]
    %s1765 = sld [smem:[#allocation2 + $0x304]]
    %s1766 = sshra.s32 %s1765, 3
    %s1767 = sand.u32 %s1765, 7
    %s1768 = sshra.s32 %s1765, 3
    %s1769 = sand.u32 %s1765, 7
    %s1770 = smul.u32 %s1766, 4
    %s1771 = smul.u32 %s1770, 8
    %s1772 = sadd.s32 %s1771, %s1769
    %s1773 = scalar_lea.vmem [#allocation6], %s1772
    %v1774 = vld [vmem:[%s1773] ss:$8 sm:$0xf]
    %s1775 = sld [smem:[#allocation2 + $0x384]]
    %s1776 = sshra.s32 %s1775, 3
    %s1777 = sand.u32 %s1775, 7
    %s1778 = sshra.s32 %s1775, 3
    %s1779 = sand.u32 %s1775, 7
    %s1780 = smul.u32 %s1776, 4
    %s1781 = smul.u32 %s1780, 8
    %s1782 = sadd.s32 %s1781, %s1779
    %s1783 = scalar_lea.vmem [#allocation6], %s1782
    %v1784 = vld [vmem:[%s1783] ss:$8 sm:$0xf]
    %v1786 = vlaneseq
    %v1787 = vshrl.u32 %v1786, 7
    %v1788 = vsub.s32 0, %v1787
    %v1789 = vrot.slane %v1714, %v1788
    %v1790 = vlaneseq
    %v1791 = vshrl.u32 %v1790, 7
    %v1792 = vsub.s32 1, %v1791
    %v1793 = vrot.slane %v1714, %v1792
    %v1794 = vlaneseq
    %v1795 = vshrl.u32 %v1794, 7
    %v1796 = vsub.s32 2, %v1795
    %v1797 = vrot.slane %v1714, %v1796
    %v1798 = vlaneseq
    %v1799 = vshrl.u32 %v1798, 7
    %v1800 = vsub.s32 3, %v1799
    %v1801 = vrot.slane %v1714, %v1800
    %v1807 = vlaneseq
    %v1808 = vshrl.u32 %v1807, 7
    %v1809 = vsub.s32 0, %v1808
    %v1810 = vrot.slane %v1724, %v1809
    %v1811 = vlaneseq
    %v1812 = vshrl.u32 %v1811, 7
    %v1813 = vsub.s32 1, %v1812
    %v1814 = vrot.slane %v1724, %v1813
    %v1815 = vlaneseq
    %v1816 = vshrl.u32 %v1815, 7
    %v1817 = vsub.s32 2, %v1816
    %v1818 = vrot.slane %v1724, %v1817
    %v1819 = vlaneseq
    %v1820 = vshrl.u32 %v1819, 7
    %v1821 = vsub.s32 3, %v1820
    %v1822 = vrot.slane %v1724, %v1821
    %v1828 = vlaneseq
    %v1829 = vshrl.u32 %v1828, 7
    %v1830 = vsub.s32 0, %v1829
    %v1831 = vrot.slane %v1734, %v1830
    %v1832 = vlaneseq
    %v1833 = vshrl.u32 %v1832, 7
    %v1834 = vsub.s32 1, %v1833
    %v1835 = vrot.slane %v1734, %v1834
    %v1836 = vlaneseq
    %v1837 = vshrl.u32 %v1836, 7
    %v1838 = vsub.s32 2, %v1837
    %v1839 = vrot.slane %v1734, %v1838
    %v1840 = vlaneseq
    %v1841 = vshrl.u32 %v1840, 7
    %v1842 = vsub.s32 3, %v1841
    %v1843 = vrot.slane %v1734, %v1842
    %v1849 = vlaneseq
    %v1850 = vshrl.u32 %v1849, 7
    %v1851 = vsub.s32 0, %v1850
    %v1852 = vrot.slane %v1744, %v1851
    %v1853 = vlaneseq
    %v1854 = vshrl.u32 %v1853, 7
    %v1855 = vsub.s32 1, %v1854
    %v1856 = vrot.slane %v1744, %v1855
    %v1857 = vlaneseq
    %v1858 = vshrl.u32 %v1857, 7
    %v1859 = vsub.s32 2, %v1858
    %v1860 = vrot.slane %v1744, %v1859
    %v1861 = vlaneseq
    %v1862 = vshrl.u32 %v1861, 7
    %v1863 = vsub.s32 3, %v1862
    %v1864 = vrot.slane %v1744, %v1863
    %v1870 = vlaneseq
    %v1871 = vshrl.u32 %v1870, 7
    %v1872 = vsub.s32 0, %v1871
    %v1873 = vrot.slane %v1754, %v1872
    %v1874 = vlaneseq
    %v1875 = vshrl.u32 %v1874, 7
    %v1876 = vsub.s32 1, %v1875
    %v1877 = vrot.slane %v1754, %v1876
    %v1878 = vlaneseq
    %v1879 = vshrl.u32 %v1878, 7
    %v1880 = vsub.s32 2, %v1879
    %v1881 = vrot.slane %v1754, %v1880
    %v1882 = vlaneseq
    %v1883 = vshrl.u32 %v1882, 7
    %v1884 = vsub.s32 3, %v1883
    %v1885 = vrot.slane %v1754, %v1884
    %v1891 = vlaneseq
    %v1892 = vshrl.u32 %v1891, 7
    %v1893 = vsub.s32 0, %v1892
    %v1894 = vrot.slane %v1764, %v1893
    %v1895 = vlaneseq
    %v1896 = vshrl.u32 %v1895, 7
    %v1897 = vsub.s32 1, %v1896
    %v1898 = vrot.slane %v1764, %v1897
    %v1899 = vlaneseq
    %v1900 = vshrl.u32 %v1899, 7
    %v1901 = vsub.s32 2, %v1900
    %v1902 = vrot.slane %v1764, %v1901
    %v1903 = vlaneseq
    %v1904 = vshrl.u32 %v1903, 7
    %v1905 = vsub.s32 3, %v1904
    %v1906 = vrot.slane %v1764, %v1905
    %v1912 = vlaneseq
    %v1913 = vshrl.u32 %v1912, 7
    %v1914 = vsub.s32 0, %v1913
    %v1915 = vrot.slane %v1774, %v1914
    %v1916 = vlaneseq
    %v1917 = vshrl.u32 %v1916, 7
    %v1918 = vsub.s32 1, %v1917
    %v1919 = vrot.slane %v1774, %v1918
    %v1920 = vlaneseq
    %v1921 = vshrl.u32 %v1920, 7
    %v1922 = vsub.s32 2, %v1921
    %v1923 = vrot.slane %v1774, %v1922
    %v1924 = vlaneseq
    %v1925 = vshrl.u32 %v1924, 7
    %v1926 = vsub.s32 3, %v1925
    %v1927 = vrot.slane %v1774, %v1926
    %v1933 = vlaneseq
    %v1934 = vshrl.u32 %v1933, 7
    %v1935 = vsub.s32 0, %v1934
    %v1936 = vrot.slane %v1784, %v1935
    %v1937 = vlaneseq
    %v1938 = vshrl.u32 %v1937, 7
    %v1939 = vsub.s32 1, %v1938
    %v1940 = vrot.slane %v1784, %v1939
    %v1941 = vlaneseq
    %v1942 = vshrl.u32 %v1941, 7
    %v1943 = vsub.s32 2, %v1942
    %v1944 = vrot.slane %v1784, %v1943
    %v1945 = vlaneseq
    %v1946 = vshrl.u32 %v1945, 7
    %v1947 = vsub.s32 3, %v1946
    %v1948 = vrot.slane %v1784, %v1947
    %v1953 = vsel %vm313, %v1789, %v1810
    %v1954 = vsel %vm313, %v1793, %v1814
    %v1955 = vsel %vm313, %v1797, %v1818
    %v1956 = vsel %vm313, %v1801, %v1822
    %v1957 = vsel %vm317, %v1953, %v1831
    %v1958 = vsel %vm317, %v1954, %v1835
    %v1959 = vsel %vm317, %v1955, %v1839
    %v1960 = vsel %vm317, %v1956, %v1843
    %v1961 = vsel %vm321, %v1957, %v1852
    %v1962 = vsel %vm321, %v1958, %v1856
    %v1963 = vsel %vm321, %v1959, %v1860
    %v1964 = vsel %vm321, %v1960, %v1864
    %v1965 = vsel %vm325, %v1961, %v1873
    %v1966 = vsel %vm325, %v1962, %v1877
    %v1967 = vsel %vm325, %v1963, %v1881
    %v1968 = vsel %vm325, %v1964, %v1885
    %v1969 = vsel %vm329, %v1965, %v1894
    %v1970 = vsel %vm329, %v1966, %v1898
    %v1971 = vsel %vm329, %v1967, %v1902
    %v1972 = vsel %vm329, %v1968, %v1906
    %v1973 = vsel %vm333, %v1969, %v1915
    %v1974 = vsel %vm333, %v1970, %v1919
    %v1975 = vsel %vm333, %v1971, %v1923
    %v1976 = vsel %vm333, %v1972, %v1927
    %v1977 = vsel %vm337, %v1973, %v1936
    %v1978 = vsel %vm337, %v1974, %v1940
    %v1979 = vsel %vm337, %v1975, %v1944
    %v1980 = vsel %vm337, %v1976, %v1948
    %v1982 = vsel %vm633, %v1704, 0
    %1984 = vmatprep.subr.mxu0 0.0
    %1985 = vmatpush1.msra.mxu0 0.0
    %1986 = vmatprep.subr.mxu0 0.0
    %1987 = vmatpush1.msra.mxu0 0.0
    %1988 = vmatprep.subr.mxu0 0.0
    %1989 = vmatpush1.msra.mxu0 0.0
    %1990 = vmatprep.subr.mxu0 0.0
    %1991 = vmatpush1.msra.mxu0 0.0
    %1992 = vmatprep.subr.mxu0 0.0
    %1993 = vmatpush1.msra.mxu0 0.0
    %1994 = vmatprep.subr.mxu0 0.0
    %1995 = vmatpush1.msra.mxu0 0.0
    %1996 = vmatprep.subr.mxu0 0.0
    %1997 = vmatpush1.msra.mxu0 0.0
    %1998 = vmatprep.subr.mxu0 0.0
    %1999 = vmatpush1.msra.mxu0 0.0
    %2000 = vmatprep.subr.mxu0 %v102
    %2001 = vmatpush1.msra.mxu0 %v101
    %2002 = vmatprep.subr.mxu0 %v98
    %2003 = vmatpush1.msra.mxu0 %v97
    %2004 = vmatprep.subr.mxu0 %v94
    %2005 = vmatpush1.msra.mxu0 %v93
    %2006 = vmatprep.subr.mxu0 %v90
    %2007 = vmatpush1.msra.mxu0 %v89
    %2008 = vmatprep.subr.mxu0 %v86
    %2009 = vmatpush1.msra.mxu0 %v85
    %2010 = vmatprep.subr.mxu0 %v82
    %2011 = vmatpush1.msra.mxu0 %v81
    %2012 = vmatprep.subr.mxu0 %v78
    %2013 = vmatpush1.msra.mxu0 %v77
    %2014 = vmatprep.subr.mxu0 %v74
    %2015 = vmatpush1.msra.mxu0 %v73
    %2016 = vmatprep.subr.mxu0 0.0
    %2017 = vmatpush2.msra.mxu0 0.0
    %2018 = vmatprep.subr.mxu0 0.0
    %2019 = vmatpush2.msra.mxu0 0.0
    %2020 = vmatprep.subr.mxu0 0.0
    %2021 = vmatpush2.msra.mxu0 0.0
    %2022 = vmatprep.subr.mxu0 0.0
    %2023 = vmatpush2.msra.mxu0 0.0
    %2024 = vmatprep.subr.mxu0 0.0
    %2025 = vmatpush2.msra.mxu0 0.0
    %2026 = vmatprep.subr.mxu0 0.0
    %2027 = vmatpush2.msra.mxu0 0.0
    %2028 = vmatprep.subr.mxu0 0.0
    %2029 = vmatpush2.msra.mxu0 0.0
    %2030 = vmatprep.subr.mxu0 0.0
    %2031 = vmatpush2.msra.mxu0 0.0
    %2032 = vmatprep.subr.mxu0 0.0
    %2033 = vmatpush2.msra.mxu0 0.0
    %2034 = vmatprep.subr.mxu0 0.0
    %2035 = vmatpush2.msra.mxu0 0.0
    %2036 = vmatprep.subr.mxu0 0.0
    %2037 = vmatpush2.msra.mxu0 0.0
    %2038 = vmatprep.subr.mxu0 0.0
    %2039 = vmatpush2.msra.mxu0 0.0
    %2040 = vmatprep.subr.mxu0 0.0
    %2041 = vmatpush2.msra.mxu0 0.0
    %2042 = vmatprep.subr.mxu0 0.0
    %2043 = vmatpush2.msra.mxu0 0.0
    %2044 = vmatprep.subr.mxu0 0.0
    %2045 = vmatpush2.msra.mxu0 0.0
    %2046 = vmatprep.subr.mxu0 0.0
    %2047 = vmatpush2.msra.mxu0 0.0
    %2048 = vmatprep.mubr.f32.mxu0 0.0
    %2049 = vmatmul.mubr.f32.gmra.mxu0 %v1982
    %v2050 = vpop.f32.mrf.mxu0
    %v2051 = vadd.f32 0.0, %v2050
    %v2052 = vpop.f32.mrf.mxu0
    %v2053 = vadd.f32 0.0, %v2052
    %2054 = vdwg.mxu0
    %2055 = vmatprep.subr.mxu0 0.0
    %2056 = vmatpush1.msra.mxu0 0.0
    %2057 = vmatprep.subr.mxu0 0.0
    %2058 = vmatpush1.msra.mxu0 0.0
    %2059 = vmatprep.subr.mxu0 0.0
    %2060 = vmatpush1.msra.mxu0 0.0
    %2061 = vmatprep.subr.mxu0 0.0
    %2062 = vmatpush1.msra.mxu0 0.0
    %2063 = vmatprep.subr.mxu0 0.0
    %2064 = vmatpush1.msra.mxu0 0.0
    %2065 = vmatprep.subr.mxu0 0.0
    %2066 = vmatpush1.msra.mxu0 0.0
    %2067 = vmatprep.subr.mxu0 0.0
    %2068 = vmatpush1.msra.mxu0 0.0
    %2069 = vmatprep.subr.mxu0 0.0
    %2070 = vmatpush1.msra.mxu0 0.0
    %2071 = vmatprep.subr.mxu0 %v104
    %2072 = vmatpush1.msra.mxu0 %v103
    %2073 = vmatprep.subr.mxu0 %v100
    %2074 = vmatpush1.msra.mxu0 %v99
    %2075 = vmatprep.subr.mxu0 %v96
    %2076 = vmatpush1.msra.mxu0 %v95
    %2077 = vmatprep.subr.mxu0 %v92
    %2078 = vmatpush1.msra.mxu0 %v91
    %2079 = vmatprep.subr.mxu0 %v88
    %2080 = vmatpush1.msra.mxu0 %v87
    %2081 = vmatprep.subr.mxu0 %v84
    %2082 = vmatpush1.msra.mxu0 %v83
    %2083 = vmatprep.subr.mxu0 %v80
    %2084 = vmatpush1.msra.mxu0 %v79
    %2085 = vmatprep.subr.mxu0 %v76
    %2086 = vmatpush1.msra.mxu0 %v75
    %2087 = vmatprep.subr.mxu0 0.0
    %2088 = vmatpush2.msra.mxu0 0.0
    %2089 = vmatprep.subr.mxu0 0.0
    %2090 = vmatpush2.msra.mxu0 0.0
    %2091 = vmatprep.subr.mxu0 0.0
    %2092 = vmatpush2.msra.mxu0 0.0
    %2093 = vmatprep.subr.mxu0 0.0
    %2094 = vmatpush2.msra.mxu0 0.0
    %2095 = vmatprep.subr.mxu0 0.0
    %2096 = vmatpush2.msra.mxu0 0.0
    %2097 = vmatprep.subr.mxu0 0.0
    %2098 = vmatpush2.msra.mxu0 0.0
    %2099 = vmatprep.subr.mxu0 0.0
    %2100 = vmatpush2.msra.mxu0 0.0
    %2101 = vmatprep.subr.mxu0 0.0
    %2102 = vmatpush2.msra.mxu0 0.0
    %2103 = vmatprep.subr.mxu0 0.0
    %2104 = vmatpush2.msra.mxu0 0.0
    %2105 = vmatprep.subr.mxu0 0.0
    %2106 = vmatpush2.msra.mxu0 0.0
    %2107 = vmatprep.subr.mxu0 0.0
    %2108 = vmatpush2.msra.mxu0 0.0
    %2109 = vmatprep.subr.mxu0 0.0
    %2110 = vmatpush2.msra.mxu0 0.0
    %2111 = vmatprep.subr.mxu0 0.0
    %2112 = vmatpush2.msra.mxu0 0.0
    %2113 = vmatprep.subr.mxu0 0.0
    %2114 = vmatpush2.msra.mxu0 0.0
    %2115 = vmatprep.subr.mxu0 0.0
    %2116 = vmatpush2.msra.mxu0 0.0
    %2117 = vmatprep.subr.mxu0 0.0
    %2118 = vmatpush2.msra.mxu0 0.0
    %2119 = vmatprep.mubr.f32.mxu0 0.0
    %2120 = vmatmul.mubr.f32.gmra.mxu0 %v1982
    %v2121 = vpop.f32.mrf.mxu0
    %v2122 = vadd.f32 0.0, %v2121
    %v2123 = vpop.f32.mrf.mxu0
    %v2124 = vadd.f32 0.0, %v2123
    %2125 = vdwg.mxu0
    %v2126 = vadd.f32 %v1977, %v2051
    %v2127 = vadd.f32 %v1978, %v2053
    %v2128 = vadd.f32 %v1979, %v2122
    %v2129 = vadd.f32 %v1980, %v2124
    %v2130 = vxor.u32 %v2126, 2147483648
    %v2131 = vmul.f32 %v2130, 1.442695
    %v2132 = vpow.pop %v2131
    %v2133 = vadd.f32 %v2132, 1.0
    %v2134 = vrcp.pop %v2133
    %v2135 = vmul.f32 1.0, %v2134
    %v2136 = vxor.u32 %v2127, 2147483648
    %v2137 = vmul.f32 %v2136, 1.442695
    %v2138 = vpow.pop %v2137
    %v2139 = vadd.f32 %v2138, 1.0
    %v2140 = vrcp.pop %v2139
    %v2141 = vmul.f32 1.0, %v2140
    %v2142 = vtanh.pop %v2128
    %v2143 = vxor.u32 %v2129, 2147483648
    %v2144 = vmul.f32 %v2143, 1.442695
    %v2145 = vpow.pop %v2144
    %v2146 = vadd.f32 %v2145, 1.0
    %v2147 = vrcp.pop %v2146
    %v2148 = vmul.f32 1.0, %v2147
    %v2149 = vmul.f32 %v2141, %v1702
    %v2150 = vmul.f32 %v2135, %v2142
    %v2151 = vadd.f32 %v2149, %v2150
    %v2152 = vtanh.pop %v2151
    %v2153 = vmul.f32 %v2148, %v2152
    %v2154 = vld [vmem:[#allocation9] sm:$0xff]
    %v2155 = vld [vmem:[#allocation9 + $0x8] sm:$0xff]
    %v2156 = vld [vmem:[#allocation9 + $0x10] sm:$0xff]
    %v2157 = vld [vmem:[#allocation9 + $0x18] sm:$0xff]
    %v2158 = vld [vmem:[#allocation9 + $0x20] sm:$0xff]
    %v2159 = vld [vmem:[#allocation9 + $0x28] sm:$0xff]
    %v2160 = vld [vmem:[#allocation9 + $0x30] sm:$0xff]
    %v2161 = vld [vmem:[#allocation9 + $0x38] sm:$0xff]
    %v2162 = vld [vmem:[#allocation9 + $0x40] sm:$0xff]
    %v2163 = vld [vmem:[#allocation9 + $0x48] sm:$0xff]
    %v2164 = vld [vmem:[#allocation9 + $0x50] sm:$0xff]
    %v2165 = vld [vmem:[#allocation9 + $0x58] sm:$0xff]
    %v2166 = vld [vmem:[#allocation9 + $0x60] sm:$0xff]
    %v2167 = vld [vmem:[#allocation9 + $0x68] sm:$0xff]
    %v2168 = vld [vmem:[#allocation9 + $0x70] sm:$0xff]
    %v2169 = vld [vmem:[#allocation9 + $0x78] sm:$0xff]
    %v2170 = vld [vmem:[#allocation9 + $0x80] sm:$0xff]
    %v2171 = vld [vmem:[#allocation9 + $0x88] sm:$0xff]
    %v2172 = vld [vmem:[#allocation9 + $0x90] sm:$0xff]
    %v2173 = vld [vmem:[#allocation9 + $0x98] sm:$0xff]
    %v2174 = vld [vmem:[#allocation9 + $0xa0] sm:$0xff]
    %v2175 = vld [vmem:[#allocation9 + $0xa8] sm:$0xff]
    %v2176 = vld [vmem:[#allocation9 + $0xb0] sm:$0xff]
    %v2177 = vld [vmem:[#allocation9 + $0xb8] sm:$0xff]
    %v2178 = vld [vmem:[#allocation9 + $0xc0] sm:$0xff]
    %v2179 = vld [vmem:[#allocation9 + $0xc8] sm:$0xff]
    %v2180 = vld [vmem:[#allocation9 + $0xd0] sm:$0xff]
    %v2181 = vld [vmem:[#allocation9 + $0xd8] sm:$0xff]
    %v2182 = vld [vmem:[#allocation9 + $0xe0] sm:$0xff]
    %v2183 = vld [vmem:[#allocation9 + $0xe8] sm:$0xff]
    %v2184 = vld [vmem:[#allocation9 + $0xf0] sm:$0xff]
    %v2185 = vld [vmem:[#allocation9 + $0xf8] sm:$0xff]
    %v2186 = vld [vmem:[%s4] sm:$0xf]
    %v2188 = vlaneseq
    %v2189 = vshrl.u32 %v2188, 7
    %v2190 = vsub.s32 0, %v2189
    %v2191 = vrot.slane %v2186, %v2190
    %v2192 = vlaneseq
    %v2193 = vshrl.u32 %v2192, 7
    %v2194 = vsub.s32 1, %v2193
    %v2195 = vrot.slane %v2186, %v2194
    %v2196 = vlaneseq
    %v2197 = vshrl.u32 %v2196, 7
    %v2198 = vsub.s32 2, %v2197
    %v2199 = vrot.slane %v2186, %v2198
    %v2200 = vlaneseq
    %v2201 = vshrl.u32 %v2200, 7
    %v2202 = vsub.s32 3, %v2201
    %v2203 = vrot.slane %v2186, %v2202
    %v2209 = vsel %vm633, %v2153, 0
    %2211 = vmatprep.subr.mxu0 0.0
    %2212 = vmatpush1.msra.mxu0 0.0
    %2213 = vmatprep.subr.mxu0 0.0
    %2214 = vmatpush1.msra.mxu0 0.0
    %2215 = vmatprep.subr.mxu0 0.0
    %2216 = vmatpush1.msra.mxu0 0.0
    %2217 = vmatprep.subr.mxu0 0.0
    %2218 = vmatpush1.msra.mxu0 0.0
    %2219 = vmatprep.subr.mxu0 0.0
    %2220 = vmatpush1.msra.mxu0 0.0
    %2221 = vmatprep.subr.mxu0 0.0
    %2222 = vmatpush1.msra.mxu0 0.0
    %2223 = vmatprep.subr.mxu0 0.0
    %2224 = vmatpush1.msra.mxu0 0.0
    %2225 = vmatprep.subr.mxu0 0.0
    %2226 = vmatpush1.msra.mxu0 0.0
    %2227 = vmatprep.subr.mxu0 %v2183
    %2228 = vmatpush1.msra.mxu0 %v2182
    %2229 = vmatprep.subr.mxu0 %v2179
    %2230 = vmatpush1.msra.mxu0 %v2178
    %2231 = vmatprep.subr.mxu0 %v2175
    %2232 = vmatpush1.msra.mxu0 %v2174
    %2233 = vmatprep.subr.mxu0 %v2171
    %2234 = vmatpush1.msra.mxu0 %v2170
    %2235 = vmatprep.subr.mxu0 %v2167
    %2236 = vmatpush1.msra.mxu0 %v2166
    %2237 = vmatprep.subr.mxu0 %v2163
    %2238 = vmatpush1.msra.mxu0 %v2162
    %2239 = vmatprep.subr.mxu0 %v2159
    %2240 = vmatpush1.msra.mxu0 %v2158
    %2241 = vmatprep.subr.mxu0 %v2155
    %2242 = vmatpush1.msra.mxu0 %v2154
    %2243 = vmatprep.subr.mxu0 0.0
    %2244 = vmatpush2.msra.mxu0 0.0
    %2245 = vmatprep.subr.mxu0 0.0
    %2246 = vmatpush2.msra.mxu0 0.0
    %2247 = vmatprep.subr.mxu0 0.0
    %2248 = vmatpush2.msra.mxu0 0.0
    %2249 = vmatprep.subr.mxu0 0.0
    %2250 = vmatpush2.msra.mxu0 0.0
    %2251 = vmatprep.subr.mxu0 0.0
    %2252 = vmatpush2.msra.mxu0 0.0
    %2253 = vmatprep.subr.mxu0 0.0
    %2254 = vmatpush2.msra.mxu0 0.0
    %2255 = vmatprep.subr.mxu0 0.0
    %2256 = vmatpush2.msra.mxu0 0.0
    %2257 = vmatprep.subr.mxu0 0.0
    %2258 = vmatpush2.msra.mxu0 0.0
    %2259 = vmatprep.subr.mxu0 0.0
    %2260 = vmatpush2.msra.mxu0 0.0
    %2261 = vmatprep.subr.mxu0 0.0
    %2262 = vmatpush2.msra.mxu0 0.0
    %2263 = vmatprep.subr.mxu0 0.0
    %2264 = vmatpush2.msra.mxu0 0.0
    %2265 = vmatprep.subr.mxu0 0.0
    %2266 = vmatpush2.msra.mxu0 0.0
    %2267 = vmatprep.subr.mxu0 0.0
    %2268 = vmatpush2.msra.mxu0 0.0
    %2269 = vmatprep.subr.mxu0 0.0
    %2270 = vmatpush2.msra.mxu0 0.0
    %2271 = vmatprep.subr.mxu0 0.0
    %2272 = vmatpush2.msra.mxu0 0.0
    %2273 = vmatprep.subr.mxu0 0.0
    %2274 = vmatpush2.msra.mxu0 0.0
    %2275 = vmatprep.mubr.f32.mxu0 0.0
    %2276 = vmatmul.mubr.f32.gmra.mxu0 %v2209
    %v2277 = vpop.f32.mrf.mxu0
    %v2278 = vadd.f32 %v2191, %v2277
    %v2279 = vpop.f32.mrf.mxu0
    %v2280 = vadd.f32 %v2195, %v2279
    %2281 = vdwg.mxu0
    %2282 = vmatprep.subr.mxu0 0.0
    %2283 = vmatpush1.msra.mxu0 0.0
    %2284 = vmatprep.subr.mxu0 0.0
    %2285 = vmatpush1.msra.mxu0 0.0
    %2286 = vmatprep.subr.mxu0 0.0
    %2287 = vmatpush1.msra.mxu0 0.0
    %2288 = vmatprep.subr.mxu0 0.0
    %2289 = vmatpush1.msra.mxu0 0.0
    %2290 = vmatprep.subr.mxu0 0.0
    %2291 = vmatpush1.msra.mxu0 0.0
    %2292 = vmatprep.subr.mxu0 0.0
    %2293 = vmatpush1.msra.mxu0 0.0
    %2294 = vmatprep.subr.mxu0 0.0
    %2295 = vmatpush1.msra.mxu0 0.0
    %2296 = vmatprep.subr.mxu0 0.0
    %2297 = vmatpush1.msra.mxu0 0.0
    %2298 = vmatprep.subr.mxu0 %v2185
    %2299 = vmatpush1.msra.mxu0 %v2184
    %2300 = vmatprep.subr.mxu0 %v2181
    %2301 = vmatpush1.msra.mxu0 %v2180
    %2302 = vmatprep.subr.mxu0 %v2177
    %2303 = vmatpush1.msra.mxu0 %v2176
    %2304 = vmatprep.subr.mxu0 %v2173
    %2305 = vmatpush1.msra.mxu0 %v2172
    %2306 = vmatprep.subr.mxu0 %v2169
    %2307 = vmatpush1.msra.mxu0 %v2168
    %2308 = vmatprep.subr.mxu0 %v2165
    %2309 = vmatpush1.msra.mxu0 %v2164
    %2310 = vmatprep.subr.mxu0 %v2161
    %2311 = vmatpush1.msra.mxu0 %v2160
    %2312 = vmatprep.subr.mxu0 %v2157
    %2313 = vmatpush1.msra.mxu0 %v2156
    %2314 = vmatprep.subr.mxu0 0.0
    %2315 = vmatpush2.msra.mxu0 0.0
    %2316 = vmatprep.subr.mxu0 0.0
    %2317 = vmatpush2.msra.mxu0 0.0
    %2318 = vmatprep.subr.mxu0 0.0
    %2319 = vmatpush2.msra.mxu0 0.0
    %2320 = vmatprep.subr.mxu0 0.0
    %2321 = vmatpush2.msra.mxu0 0.0
    %2322 = vmatprep.subr.mxu0 0.0
    %2323 = vmatpush2.msra.mxu0 0.0
    %2324 = vmatprep.subr.mxu0 0.0
    %2325 = vmatpush2.msra.mxu0 0.0
    %2326 = vmatprep.subr.mxu0 0.0
    %2327 = vmatpush2.msra.mxu0 0.0
    %2328 = vmatprep.subr.mxu0 0.0
    %2329 = vmatpush2.msra.mxu0 0.0
    %2330 = vmatprep.subr.mxu0 0.0
    %2331 = vmatpush2.msra.mxu0 0.0
    %2332 = vmatprep.subr.mxu0 0.0
    %2333 = vmatpush2.msra.mxu0 0.0
    %2334 = vmatprep.subr.mxu0 0.0
    %2335 = vmatpush2.msra.mxu0 0.0
    %2336 = vmatprep.subr.mxu0 0.0
    %2337 = vmatpush2.msra.mxu0 0.0
    %2338 = vmatprep.subr.mxu0 0.0
    %2339 = vmatpush2.msra.mxu0 0.0
    %2340 = vmatprep.subr.mxu0 0.0
    %2341 = vmatpush2.msra.mxu0 0.0
    %2342 = vmatprep.subr.mxu0 0.0
    %2343 = vmatpush2.msra.mxu0 0.0
    %2344 = vmatprep.subr.mxu0 0.0
    %2345 = vmatpush2.msra.mxu0 0.0
    %2346 = vmatprep.mubr.f32.mxu0 0.0
    %2347 = vmatmul.mubr.f32.gmra.mxu0 %v2209
    %v2348 = vpop.f32.mrf.mxu0
    %v2349 = vadd.f32 %v2199, %v2348
    %v2350 = vpop.f32.mrf.mxu0
    %v2351 = vadd.f32 %v2203, %v2350
    %2352 = vdwg.mxu0
    %v2353 = vmax.f32 %v2278, %v2280
    %v2354 = vmax.f32 %v2349, %v2351
    %v2355 = vmax.f32 %v2353, %v2354
    %2356 = vmax.xlane.f32.xlu0 %v2355
    %v2357 = vpop.xlane.xlu0 %2356
    %v2358 = vsub.f32 %v2278, %v2357
    %v2359 = vsub.f32 %v2280, %v2357
    %v2360 = vsub.f32 %v2349, %v2357
    %v2361 = vsub.f32 %v2351, %v2357
    %v2362 = vmul.f32 %v2358, 1.442695
    %v2363 = vpow.pop %v2362
    %v2364 = vmul.f32 %v2359, 1.442695
    %v2365 = vpow.pop %v2364
    %v2366 = vmul.f32 %v2360, 1.442695
    %v2367 = vpow.pop %v2366
    %v2368 = vmul.f32 %v2361, 1.442695
    %v2369 = vpow.pop %v2368
    %v2370 = vadd.f32 %v2363, %v2365
    %v2371 = vadd.f32 %v2370, %v2367
    %v2372 = vadd.f32 %v2371, %v2369
    %2373 = vadd.xlane.f32.xlu0 %v2372
    %v2374 = vpop.xlane.xlu0 %2373
    %v2375 = vrcp.pop %v2374
    %v2376 = vmul.f32 %v2363, %v2375
    %v2377 = vmul.f32 %v2365, %v2375
    %v2378 = vmul.f32 %v2367, %v2375
    %v2379 = vmul.f32 %v2369, %v2375
    %2380 = vst [vmem:[#allocation10] sm:$0xff] %v2376
    %2381 = vst [vmem:[#allocation10 + $0x8] sm:$0xff] %v2377
    %2382 = vst [vmem:[#allocation10 + $0x10] sm:$0xff] %v2378
    %2383 = vst [vmem:[#allocation10 + $0x18] sm:$0xff] %v2379
    // Predicated region
    $region38: #{tpu_custom_call.1} parent=1 // pred_check
      _
    $region39: #{tpu_custom_call.1} parent=1 // pred_check_branch
      %2385 = sbr.rel (0) target = $region41
    $region40: #{tpu_custom_call.1} parent=1 // pred_region
      %s2387 = ssub.s32 512, 512
      %2388 = vsyncadd [#allocation4], %s2387
      %s2390 = sshll.u32 [#allocation10], 4
      %s2391 = int_to_ptr.vmem [resolvable:$true] %s2390
      %2393 = dma.vmem_to_hbm [thread:$0]  %s2391, 512, %s5, [#allocation4]
    $region41: #{tpu_custom_call.1} parent=1 // pred_fallthru
      _
    // Predicated region
    $region42: #{tpu_custom_call.1} parent=1 // pred_check
      _
    $region43: #{tpu_custom_call.1} parent=1 // pred_check_branch
      %2395 = sbr.rel (0) target = $region45
    $region44: #{tpu_custom_call.1} parent=1 // pred_region
      %2396 = dma.done [#allocation4], 512
    $region45: #{tpu_custom_call.1} parent=1 // pred_fallthru
      _
    %2397 = vsyncpa [#allocation3], 1
    %2398 = vsyncpa [#allocation8], 1
    %2399 = vsyncpa [#allocation4], 1
    %2400 = vsyncpa [#allocation5], 1

</llo_original>
